<compile_context>
chip_gen: v5e
topology: v5e:2x2
jax: 0.10.0
libtpu: 0.0.40
codegen_flags: <defaults>
</compile_context>

<pallas_src>
import functools

import jax
import jax.numpy as jnp
from jax import lax
from jax.experimental import pallas as pl
from jax.experimental.pallas import tpu as pltpu


# --------------------------------------------------------------------------
# Per-generation VMEM budget (per-block byte budget, vmem_limit_bytes)
# --------------------------------------------------------------------------
def _vmem_budget():
    cap = 64 << 20
    try:
        cap = int(getattr(pltpu.get_tpu_info(), "vmem_capacity_bytes", cap))
    except Exception:
        pass
    if cap >= (100 << 20):            # v5e / v6e class: 128 MiB VMEM
        return 12 << 20, 96 << 20
    return 4 << 20, 48 << 20          # v7x class: 64 MiB VMEM per TensorCore


# --------------------------------------------------------------------------
# Lane-axis tile: multiple of 128 dividing n (or full n), VMEM-bounded,
# keeping >= min_steps grid steps when possible (v7x has 2 TensorCores).
# --------------------------------------------------------------------------
def _pick_lane_tile(n, bytes_per_lane, budget_bytes, min_steps=1):
    if n <= 128:
        return n
    cap = max(128, (budget_bytes // max(int(bytes_per_lane), 1)) // 128 * 128)
    divisors = [d for d in range(128, n + 1, 128) if n % d == 0]
    if not divisors:
        return n       # ragged size with no 128-multiple divisor (rare, small)
    ok = [d for d in divisors if d <= cap and n // d >= min_steps]
    if ok:
        return max(ok)
    under = [d for d in divisors if d <= cap]
    if under:
        return max(under)
    return min(divisors)   # everything over budget: smallest divisor bounds VMEM


# --------------------------------------------------------------------------
# Kernel 2: theta (patch matmul) + phi_g add + ReLU + psi 1x1 conv + sigmoid
#   xp:  (K, TNt) bf16   phi: (Ci, TNt) bf16   wth: (Ci, K) bf16
#   out: (1, TNt) f32    -- lane-dense attention row
# --------------------------------------------------------------------------
def _theta_att_kernel(xp_ref, phi_ref, wth_ref, bth_ref, wpsi_ref, bpsi_ref,
                      att_ref):
    theta = jnp.dot(wth_ref[...], xp_ref[0],
                    preferred_element_type=jnp.float32)          # (Ci, TNt) f32
    f = jnp.maximum(theta + bth_ref[...] + phi_ref[0], 0.0)      # ReLU
    # psi: Ci -> 1 via per-channel weight + sublane reduce (spatial stays on lanes)
    psi = jnp.sum(f * wpsi_ref[...], axis=0, keepdims=True) + bpsi_ref[0, 0]
    att_ref[0] = 1.0 / (1.0 + jnp.exp(-psi))                     # exact sigmoid


# --------------------------------------------------------------------------
# Kernel 3: stats-only pass. gate * x, 1x1 conv W, per-tile BN partial sums.
#   x: (C, TN) bf16   att: (1, TN) bf16   ww: (C, C) bf16
# --------------------------------------------------------------------------
def _gate_stats_kernel(x_ref, att_ref, ww_ref, bw_ref, ssum_ref, ssq_ref):
    y = att_ref[0] * x_ref[0]                                    # (C, TN) bf16
    wy = (jnp.dot(ww_ref[...], y, preferred_element_type=jnp.float32)
          + bw_ref[...])                                         # (C, TN) f32
    ssum_ref[0, 0] = jnp.sum(wy, axis=1, keepdims=True)          # (C, 1)
    ssq_ref[0, 0] = jnp.sum(wy * wy, axis=1, keepdims=True)      # (C, 1)


# --------------------------------------------------------------------------
# Kernel 4: recompute gate + W 1x1 conv, apply BatchNorm, write W_y (NCHW).
# --------------------------------------------------------------------------
def _gate_w_bn_kernel(x_ref, att_ref, ww_ref, bw_ref, scale_ref, shift_ref,
                      out_ref):
    y = att_ref[0] * x_ref[0]                                    # (C, TN) bf16
    wy = (jnp.dot(ww_ref[...], y, preferred_element_type=jnp.float32)
          + bw_ref[...])                                         # (C, TN) f32
    out_ref[0] = wy * scale_ref[...] + shift_ref[...]


# --------------------------------------------------------------------------
# Wrapper
# --------------------------------------------------------------------------
def grid_attention_block_2d(x_nchw, g_nchw, params, sub_sample_factor=(2, 2)):
    """x: (B, C, H, W), g: (B, Cg, Hg, Wg). Returns (W_y, sigm_psi_f)."""
    f32, bf16 = jnp.float32, jnp.bfloat16
    B, C, H, W = x_nchw.shape
    _, Cg, Hg, Wg = g_nchw.shape
    sh, sw = sub_sample_factor
    Ci = params["w_theta"].shape[0]

    Ht = (H - sh) // sh + 1
    Wt = (W - sw) // sw + 1
    Nt = Ht * Wt
    N = H * W
    Ng = Hg * Wg
    K = C * sh * sw

    budget, vmem_limit = _vmem_budget()
    min_steps = 2 if B == 1 else 1
    par2 = pltpu.CompilerParams(
        dimension_semantics=("parallel", "parallel"),
        vmem_limit_bytes=vmem_limit)

    # ---- weights: matmul operands pre-cast to bf16 once; biases stay f32 ----
    w_theta = params["w_theta"].astype(bf16)        # (Ci, K)
    w_W = params["w_W"].astype(bf16)                # (C, C)
    b_theta = params["b_theta"]                     # (Ci, 1) f32
    b_W = params["b_W"]                             # (C, 1)  f32
    w_psi = params["w_psi"]                         # (Ci, 1) f32 (VPU-only)
    b_psi = params["b_psi"]                         # (1, 1)  f32 (SMEM scalar)

    # ---- phi 1x1 conv on g: tiny, leave to XLA so it fuses with the resize ----
    g_cf = g_nchw.reshape(B, Cg, Ng).astype(f32)
    phi_small = (jnp.einsum("ic,bcn->bin", params["w_phi"], g_cf)
                 + params["b_phi"][None])           # (B, Ci, Ng)
    phi_up = jax.image.resize(phi_small.reshape(B, Ci, Hg, Wg),
                              (B, Ci, Ht, Wt), method="bilinear")
    phi_up_cf = phi_up.reshape(B, Ci, Nt).astype(bf16)

    # ---- theta's strided conv as a patch matmul (channel-first, bf16) ----
    # patch flatten order (c, kh, kw) matches Conv2d weight (Ci, C, kh, kw).
    xc = x_nchw[:, :, :Ht * sh, :Wt * sw].astype(bf16)
    xp = xc.reshape(B, C, Ht, sh, Wt, sw)
    xp = jnp.transpose(xp, (0, 1, 3, 5, 2, 4)).reshape(B, K, Nt)   # (B, K, Nt)

    # ---- K2: theta + add + ReLU + psi + sigmoid ----
    k2_bytes_per_lane = 2 * 2 * (K + Ci) + 2 * 4   # dbl-buffered bf16 in + f32 out
    TNt = _pick_lane_tile(Nt, k2_bytes_per_lane, budget, min_steps)
    att_small = pl.pallas_call(
        _theta_att_kernel,
        out_shape=jax.ShapeDtypeStruct((B, 1, Nt), f32),
        grid=(B, Nt // TNt),
        in_specs=[pl.BlockSpec((1, K, TNt), lambda b, n: (b, 0, n)),
                  pl.BlockSpec((1, Ci, TNt), lambda b, n: (b, 0, n)),
                  pl.BlockSpec((Ci, K), lambda b, n: (0, 0)),
                  pl.BlockSpec((Ci, 1), lambda b, n: (0, 0)),
                  pl.BlockSpec((Ci, 1), lambda b, n: (0, 0)),
                  pl.BlockSpec(memory_space=pltpu.MemorySpace.SMEM)],
        out_specs=pl.BlockSpec((1, 1, TNt), lambda b, n: (b, 0, n)),
        compiler_params=par2,
    )(xp, phi_up_cf, w_theta, b_theta, w_psi, b_psi)

    # ---- bilinear resize attention map back to input size (plain JAX) ----
    att_up = jax.image.resize(att_small.reshape(B, 1, Ht, Wt),
                              (B, 1, H, W), method="bilinear")    # f32, returned
    att_cf = att_up.reshape(B, 1, N).astype(bf16)
    x_cf = x_nchw.reshape(B, C, N).astype(bf16)

    k34_bytes_per_lane = 2 * 2 * (C + 1) + 2 * 4 * C
    TN = _pick_lane_tile(N, k34_bytes_per_lane, budget, min_steps)
    nN = N // TN

    # ---- K3: gate + W 1x1 conv, BN partial stats only (no wy writeback) ----
    ssum, ssq = pl.pallas_call(
        _gate_stats_kernel,
        out_shape=(jax.ShapeDtypeStruct((B, nN, C, 1), f32),
                   jax.ShapeDtypeStruct((B, nN, C, 1), f32)),
        grid=(B, nN),
        in_specs=[pl.BlockSpec((1, C, TN), lambda b, n: (b, 0, n)),
                  pl.BlockSpec((1, 1, TN), lambda b, n: (b, 0, n)),
                  pl.BlockSpec((C, C), lambda b, n: (0, 0)),
                  pl.BlockSpec((C, 1), lambda b, n: (0, 0))],
        out_specs=(pl.BlockSpec((1, 1, C, 1), lambda b, n: (b, n, 0, 0)),
                   pl.BlockSpec((1, 1, C, 1), lambda b, n: (b, n, 0, 0))),
        compiler_params=par2,
    )(x_cf, att_cf, w_W, b_W)

    # ---- BatchNorm2d (training-mode batch stats), tiny finalize in JAX ----
    # TODO(synk): sum/sumsq finalize can lose precision for huge B*N; a
    # mean-centered second pass would be more robust if parity is tight.
    count = jnp.float32(B * N)
    mean = jnp.sum(ssum, axis=(0, 1))[:, 0] / count               # (C,)
    var = jnp.sum(ssq, axis=(0, 1))[:, 0] / count - mean * mean   # biased
    eps = 1e-5
    scale_vec = params["bn_gamma"] * lax.rsqrt(var + eps)
    shift_vec = params["bn_beta"] - mean * scale_vec
    scale = scale_vec.reshape(C, 1).astype(f32)
    shift = shift_vec.reshape(C, 1).astype(f32)

    # ---- K4: recompute gate + W conv, apply BN, write W_y once (NCHW) ----
    w_y_cf = pl.pallas_call(
        _gate_w_bn_kernel,
        out_shape=jax.ShapeDtypeStruct((B, C, N), f32),
        grid=(B, nN),
        in_specs=[pl.BlockSpec((1, C, TN), lambda b, n: (b, 0, n)),
                  pl.BlockSpec((1, 1, TN), lambda b, n: (b, 0, n)),
                  pl.BlockSpec((C, C), lambda b, n: (0, 0)),
                  pl.BlockSpec((C, 1), lambda b, n: (0, 0)),
                  pl.BlockSpec((C, 1), lambda b, n: (0, 0)),
                  pl.BlockSpec((C, 1), lambda b, n: (0, 0))],
        out_specs=pl.BlockSpec((1, C, TN), lambda b, n: (b, 0, n)),
        compiler_params=par2,
    )(x_cf, att_cf, w_W, b_W, scale, shift)

    w_y = w_y_cf.reshape(B, C, H, W)          # already NCHW, no transpose pass
    return w_y, att_up


# --------------------------------------------------------------------------
# Deterministic parameter construction (kaiming-normal-like, fan_in mode),
# stored channel-first: conv weight rows = out channels, cols = flattened in.
# --------------------------------------------------------------------------
def make_params(key, in_channels, gating_channels, inter_channels,
                sub_sample_factor):
    sh, sw = sub_sample_factor
    ks = jax.random.split(key, 6)
    K = in_channels * sh * sw

    def kaiming(k, fan_in, shape):
        return ((2.0 / fan_in) ** 0.5) * jax.random.normal(k, shape, jnp.float32)

    return {
        # theta: Conv2d(C, Ci, k=stride=sub_sample) as (Ci, C*sh*sw),
        # patch flattened in (c, kh, kw) order.
        "w_theta": kaiming(ks[0], K, (inter_channels, K)),
        "b_theta": jnp.zeros((inter_channels, 1), jnp.float32),
        # phi: Conv2d(Cg, Ci, 1) as (Ci, Cg)
        "w_phi": kaiming(ks[1], gating_channels,
                         (inter_channels, gating_channels)),
        "b_phi": jnp.zeros((inter_channels, 1), jnp.float32),
        # psi: Conv2d(Ci, 1, 1) stored as a (Ci, 1) column
        "w_psi": kaiming(ks[2], inter_channels, (inter_channels, 1)),
        "b_psi": jnp.zeros((1, 1), jnp.float32),
        # W: Conv2d(C, C, 1) as (C_out, C_in)
        "w_W": kaiming(ks[3], in_channels, (in_channels, in_channels)),
        "b_W": jnp.zeros((in_channels, 1), jnp.float32),
        # BatchNorm2d affine (kaiming init path: weight ~ N(1, 0.02), bias 0)
        "bn_gamma": 1.0 + 0.02 * jax.random.normal(
            ks[4], (in_channels,), jnp.float32),
        "bn_beta": jnp.zeros((in_channels,), jnp.float32),
    }


if __name__ == "__main__":
    B, C, H, W = 2, 4, 16, 16          # input feature map
    Cg, Hg, Wg = 8, 8, 8               # gating signal
    inter = max(C // 2, 1)
    sub = (2, 2)

    key = jax.random.PRNGKey(0)
    kx, kg, kp = jax.random.split(key, 3)
    x = jax.random.normal(kx, (B, C, H, W), jnp.float32)
    g = jax.random.normal(kg, (B, Cg, Hg, Wg), jnp.float32)
    params = make_params(kp, C, Cg, inter, sub)

    fn = jax.jit(functools.partial(grid_attention_block_2d,
                                   sub_sample_factor=sub))
    w_y, att = fn(x, g, params)
    jax.block_until_ready((w_y, att))
    assert w_y.shape == (B, C, H, W)
    assert att.shape == (B, 1, H, W)
    print("KERNEL_OK")
</pallas_src>

<mosaic_0001>
module attributes {stable_mosaic.version = 11 : i64} {
  func.func @_theta_att_kernel(%arg0: i32, %arg1: i32, %arg2: memref<1x16x64xbf16, #tpu.memory_space<vmem>>, %arg3: memref<1x2x64xbf16, #tpu.memory_space<vmem>>, %arg4: memref<2x16xbf16, #tpu.memory_space<vmem>>, %arg5: memref<2x1xf32, #tpu.memory_space<vmem>>, %arg6: memref<2x1xf32, #tpu.memory_space<vmem>>, %arg7: memref<1x1xf32, #tpu.memory_space<smem>>, %arg8: memref<1x1x64xf32, #tpu.memory_space<vmem>>) attributes {dimension_semantics = [#tpu.dimension_semantics<parallel>, #tpu.dimension_semantics<parallel>], iteration_bounds = array<i64: 2, 1>, scalar_prefetch = 0 : i64, scratch_operands = 0 : i64, tpu.core_type = #tpu.core_type<tc>, window_params = [{transform_indices = @transform_0, window_bounds = array<i64: 1, 16, 64>}, {transform_indices = @transform_1, window_bounds = array<i64: 1, 2, 64>}, {pipeline_mode = #tpu.pipeline_mode<synchronous>, transform_indices = @transform_2, window_bounds = array<i64: 2, 16>}, {pipeline_mode = #tpu.pipeline_mode<synchronous>, transform_indices = @transform_3, window_bounds = array<i64: 2, 1>}, {pipeline_mode = #tpu.pipeline_mode<synchronous>, transform_indices = @transform_4, window_bounds = array<i64: 2, 1>}, {transform_indices = @transform_5, window_bounds = array<i64: 1, 1>}, {transform_indices = @transform_6, window_bounds = array<i64: 1, 1, 64>}]} {
    %c0 = arith.constant 0 : index
    %c0_0 = arith.constant 0 : index
    %0 = vector.load %arg4[%c0, %c0_0] : memref<2x16xbf16, #tpu.memory_space<vmem>>, vector<2x16xbf16>
    %c0_1 = arith.constant 0 : index
    %c0_2 = arith.constant 0 : index
    %c0_3 = arith.constant 0 : index
    %1 = vector.load %arg2[%c0_1, %c0_2, %c0_3] : memref<1x16x64xbf16, #tpu.memory_space<vmem>>, vector<1x16x64xbf16>
    %2 = vector.shape_cast %1 : vector<1x16x64xbf16> to vector<16x64xbf16>
    %cst = arith.constant dense<0.000000e+00> : vector<2x64xf32>
    %3 = tpu.matmul %0, %2, %cst {dimension_numbers = #tpu.dot_dimension_numbers<[1], [0], [0], [1], [0, 0, 1, 1], [], []>} : vector<2x16xbf16>, vector<16x64xbf16>, vector<2x64xf32> -> vector<2x64xf32>
    %c0_4 = arith.constant 0 : index
    %c0_5 = arith.constant 0 : index
    %4 = vector.load %arg5[%c0_4, %c0_5] : memref<2x1xf32, #tpu.memory_space<vmem>>, vector<2x1xf32>
    %5 = vector.broadcast %4 : vector<2x1xf32> to vector<2x64xf32>
    %6 = arith.addf %3, %5 : vector<2x64xf32>
    %c0_6 = arith.constant 0 : index
    %c0_7 = arith.constant 0 : index
    %c0_8 = arith.constant 0 : index
    %7 = vector.load %arg3[%c0_6, %c0_7, %c0_8] : memref<1x2x64xbf16, #tpu.memory_space<vmem>>, vector<1x2x64xbf16>
    %8 = vector.shape_cast %7 : vector<1x2x64xbf16> to vector<2x64xbf16>
    %9 = arith.extf %8 : vector<2x64xbf16> to vector<2x64xf32>
    %10 = arith.addf %6, %9 : vector<2x64xf32>
    %cst_9 = arith.constant 0.000000e+00 : f32
    %11 = vector.broadcast %cst_9 : f32 to vector<2x64xf32>
    %12 = arith.maximumf %10, %11 : vector<2x64xf32>
    %c0_10 = arith.constant 0 : index
    %c0_11 = arith.constant 0 : index
    %13 = vector.load %arg6[%c0_10, %c0_11] : memref<2x1xf32, #tpu.memory_space<vmem>>, vector<2x1xf32>
    %14 = vector.broadcast %13 : vector<2x1xf32> to vector<2x64xf32>
    %15 = arith.mulf %12, %14 : vector<2x64xf32>
    %cst_12 = arith.constant dense<0.000000e+00> : vector<64xf32>
    %16 = vector.multi_reduction <add>, %15, %cst_12 [0] : vector<2x64xf32> to vector<64xf32>
    %17 = vector.shape_cast %16 : vector<64xf32> to vector<1x64xf32>
    %c0_13 = arith.constant 0 : index
    %c0_14 = arith.constant 0 : index
    %18 = memref.load %arg7[%c0_13, %c0_14] : memref<1x1xf32, #tpu.memory_space<smem>>
    %19 = vector.broadcast %18 : f32 to vector<1x64xf32>
    %20 = arith.addf %17, %19 : vector<1x64xf32>
    %cst_15 = arith.constant 0.000000e+00 : f32
    %21 = vector.broadcast %cst_15 : f32 to vector<1x64xf32>
    %22 = arith.subf %21, %20 : vector<1x64xf32>
    %23 = math.exp %22 : vector<1x64xf32>
    %cst_16 = arith.constant 1.000000e+00 : f32
    %24 = vector.broadcast %cst_16 : f32 to vector<1x64xf32>
    %25 = arith.addf %24, %23 : vector<1x64xf32>
    %cst_17 = arith.constant 1.000000e+00 : f32
    %26 = vector.broadcast %cst_17 : f32 to vector<1x64xf32>
    %27 = arith.divf %26, %25 : vector<1x64xf32>
    %c0_18 = arith.constant 0 : index
    %c0_19 = arith.constant 0 : index
    %c0_20 = arith.constant 0 : index
    %28 = vector.load %arg8[%c0_18, %c0_19, %c0_20] : memref<1x1x64xf32, #tpu.memory_space<vmem>>, vector<1x1x64xf32>
    %29 = vector.shape_cast %28 : vector<1x1x64xf32> to vector<1x64xf32>
    %30 = vector.shape_cast %27 : vector<1x64xf32> to vector<1x1x64xf32>
    tpu.vector_store %arg8[%c0_18, %c0_19, %c0_20], %30 {strides = array<i32>} : memref<1x1x64xf32, #tpu.memory_space<vmem>>, vector<1x1x64xf32>,
    return
  }
  func.func @transform_0(%arg0: i32, %arg1: i32) -> (i32, i32, i32) {
    %c0_i32 = arith.constant 0 : i32
    %c0_i32_0 = arith.constant 0 : i32
    return %arg0, %c0_i32, %arg1 : i32, i32, i32
  }
  func.func @transform_1(%arg0: i32, %arg1: i32) -> (i32, i32, i32) {
    %c0_i32 = arith.constant 0 : i32
    %c0_i32_0 = arith.constant 0 : i32
    return %arg0, %c0_i32, %arg1 : i32, i32, i32
  }
  func.func @transform_2(%arg0: i32, %arg1: i32) -> (i32, i32) {
    %c0_i32 = arith.constant 0 : i32
    %c0_i32_0 = arith.constant 0 : i32
    %c0_i32_1 = arith.constant 0 : i32
    return %c0_i32, %c0_i32_0 : i32, i32
  }
  func.func @transform_3(%arg0: i32, %arg1: i32) -> (i32, i32) {
    %c0_i32 = arith.constant 0 : i32
    %c0_i32_0 = arith.constant 0 : i32
    %c0_i32_1 = arith.constant 0 : i32
    return %c0_i32, %c0_i32_0 : i32, i32
  }
  func.func @transform_4(%arg0: i32, %arg1: i32) -> (i32, i32) {
    %c0_i32 = arith.constant 0 : i32
    %c0_i32_0 = arith.constant 0 : i32
    %c0_i32_1 = arith.constant 0 : i32
    return %c0_i32, %c0_i32_0 : i32, i32
  }
  func.func @transform_5(%arg0: i32, %arg1: i32) -> (i32, i32) {
    %c0_i32 = arith.constant 0 : i32
    %c0_i32_0 = arith.constant 0 : i32
    %c0_i32_1 = arith.constant 0 : i32
    return %c0_i32, %c0_i32_0 : i32, i32
  }
  func.func @transform_6(%arg0: i32, %arg1: i32) -> (i32, i32, i32) {
    %c0_i32 = arith.constant 0 : i32
    %c0_i32_0 = arith.constant 0 : i32
    return %arg0, %c0_i32, %arg1 : i32, i32, i32
  }
}

module attributes {stable_mosaic.version = 11 : i64} {
  func.func @_gate_w_bn_kernel(%arg0: i32, %arg1: i32, %arg2: memref<1x4x256xbf16, #tpu.memory_space<vmem>>, %arg3: memref<1x1x256xbf16, #tpu.memory_space<vmem>>, %arg4: memref<4x4xbf16, #tpu.memory_space<vmem>>, %arg5: memref<4x1xf32, #tpu.memory_space<vmem>>, %arg6: memref<4x1xf32, #tpu.memory_space<vmem>>, %arg7: memref<4x1xf32, #tpu.memory_space<vmem>>, %arg8: memref<1x4x256xf32, #tpu.memory_space<vmem>>) attributes {dimension_semantics = [#tpu.dimension_semantics<parallel>, #tpu.dimension_semantics<parallel>], iteration_bounds = array<i64: 2, 1>, scalar_prefetch = 0 : i64, scratch_operands = 0 : i64, tpu.core_type = #tpu.core_type<tc>, window_params = [{transform_indices = @transform_0, window_bounds = array<i64: 1, 4, 256>}, {transform_indices = @transform_1, window_bounds = array<i64: 1, 1, 256>}, {pipeline_mode = #tpu.pipeline_mode<synchronous>, transform_indices = @transform_2, window_bounds = array<i64: 4, 4>}, {pipeline_mode = #tpu.pipeline_mode<synchronous>, transform_indices = @transform_3, window_bounds = array<i64: 4, 1>}, {pipeline_mode = #tpu.pipeline_mode<synchronous>, transform_indices = @transform_4, window_bounds = array<i64: 4, 1>}, {pipeline_mode = #tpu.pipeline_mode<synchronous>, transform_indices = @transform_5, window_bounds = array<i64: 4, 1>}, {transform_indices = @transform_6, window_bounds = array<i64: 1, 4, 256>}]} {
    %c0 = arith.constant 0 : index
    %c0_0 = arith.constant 0 : index
    %c0_1 = arith.constant 0 : index
    %0 = vector.load %arg3[%c0, %c0_0, %c0_1] : memref<1x1x256xbf16, #tpu.memory_space<vmem>>, vector<1x1x256xbf16>
    %1 = vector.shape_cast %0 : vector<1x1x256xbf16> to vector<1x256xbf16>
    %c0_2 = arith.constant 0 : index
    %c0_3 = arith.constant 0 : index
    %c0_4 = arith.constant 0 : index
    %2 = vector.load %arg2[%c0_2, %c0_3, %c0_4] : memref<1x4x256xbf16, #tpu.memory_space<vmem>>, vector<1x4x256xbf16>
    %3 = vector.shape_cast %2 : vector<1x4x256xbf16> to vector<4x256xbf16>
    %4 = vector.broadcast %1 : vector<1x256xbf16> to vector<4x256xbf16>
    %5 = arith.mulf %4, %3 : vector<4x256xbf16>
    %c0_5 = arith.constant 0 : index
    %c0_6 = arith.constant 0 : index
    %6 = vector.load %arg4[%c0_5, %c0_6] : memref<4x4xbf16, #tpu.memory_space<vmem>>, vector<4x4xbf16>
    %cst = arith.constant dense<0.000000e+00> : vector<4x256xf32>
    %7 = tpu.matmul %6, %5, %cst {dimension_numbers = #tpu.dot_dimension_numbers<[1], [0], [0], [1], [0, 0, 1, 1], [], []>} : vector<4x4xbf16>, vector<4x256xbf16>, vector<4x256xf32> -> vector<4x256xf32>
    %c0_7 = arith.constant 0 : index
    %c0_8 = arith.constant 0 : index
    %8 = vector.load %arg5[%c0_7, %c0_8] : memref<4x1xf32, #tpu.memory_space<vmem>>, vector<4x1xf32>
    %9 = vector.broadcast %8 : vector<4x1xf32> to vector<4x256xf32>
    %10 = arith.addf %7, %9 : vector<4x256xf32>
    %c0_9 = arith.constant 0 : index
    %c0_10 = arith.constant 0 : index
    %11 = vector.load %arg6[%c0_9, %c0_10] : memref<4x1xf32, #tpu.memory_space<vmem>>, vector<4x1xf32>
    %12 = vector.broadcast %11 : vector<4x1xf32> to vector<4x256xf32>
    %13 = arith.mulf %10, %12 : vector<4x256xf32>
    %c0_11 = arith.constant 0 : index
    %c0_12 = arith.constant 0 : index
    %14 = vector.load %arg7[%c0_11, %c0_12] : memref<4x1xf32, #tpu.memory_space<vmem>>, vector<4x1xf32>
    %15 = vector.broadcast %14 : vector<4x1xf32> to vector<4x256xf32>
    %16 = arith.addf %13, %15 : vector<4x256xf32>
    %c0_13 = arith.constant 0 : index
    %c0_14 = arith.constant 0 : index
    %c0_15 = arith.constant 0 : index
    %17 = vector.load %arg8[%c0_13, %c0_14, %c0_15] : memref<1x4x256xf32, #tpu.memory_space<vmem>>, vector<1x4x256xf32>
    %18 = vector.shape_cast %17 : vector<1x4x256xf32> to vector<4x256xf32>
    %19 = vector.shape_cast %16 : vector<4x256xf32> to vector<1x4x256xf32>
    tpu.vector_store %arg8[%c0_13, %c0_14, %c0_15], %19 {strides = array<i32>} : memref<1x4x256xf32, #tpu.memory_space<vmem>>, vector<1x4x256xf32>,
    return
  }
  func.func @transform_0(%arg0: i32, %arg1: i32) -> (i32, i32, i32) {
    %c0_i32 = arith.constant 0 : i32
    %c0_i32_0 = arith.constant 0 : i32
    return %arg0, %c0_i32, %arg1 : i32, i32, i32
  }
  func.func @transform_1(%arg0: i32, %arg1: i32) -> (i32, i32, i32) {
    %c0_i32 = arith.constant 0 : i32
    %c0_i32_0 = arith.constant 0 : i32
    return %arg0, %c0_i32, %arg1 : i32, i32, i32
  }
  func.func @transform_2(%arg0: i32, %arg1: i32) -> (i32, i32) {
    %c0_i32 = arith.constant 0 : i32
    %c0_i32_0 = arith.constant 0 : i32
    %c0_i32_1 = arith.constant 0 : i32
    return %c0_i32, %c0_i32_0 : i32, i32
  }
  func.func @transform_3(%arg0: i32, %arg1: i32) -> (i32, i32) {
    %c0_i32 = arith.constant 0 : i32
    %c0_i32_0 = arith.constant 0 : i32
    %c0_i32_1 = arith.constant 0 : i32
    return %c0_i32, %c0_i32_0 : i32, i32
  }
  func.func @transform_4(%arg0: i32, %arg1: i32) -> (i32, i32) {
    %c0_i32 = arith.constant 0 : i32
    %c0_i32_0 = arith.constant 0 : i32
    %c0_i32_1 = arith.constant 0 : i32
    return %c0_i32, %c0_i32_0 : i32, i32
  }
  func.func @transform_5(%arg0: i32, %arg1: i32) -> (i32, i32) {
    %c0_i32 = arith.constant 0 : i32
    %c0_i32_0 = arith.constant 0 : i32
    %c0_i32_1 = arith.constant 0 : i32
    return %c0_i32, %c0_i32_0 : i32, i32
  }
  func.func @transform_6(%arg0: i32, %arg1: i32) -> (i32, i32, i32) {
    %c0_i32 = arith.constant 0 : i32
    %c0_i32_0 = arith.constant 0 : i32
    return %arg0, %c0_i32, %arg1 : i32, i32, i32
  }
}

module attributes {stable_mosaic.version = 11 : i64} {
  func.func @_gate_stats_kernel(%arg0: i32, %arg1: i32, %arg2: memref<1x4x256xbf16, #tpu.memory_space<vmem>>, %arg3: memref<1x1x256xbf16, #tpu.memory_space<vmem>>, %arg4: memref<4x4xbf16, #tpu.memory_space<vmem>>, %arg5: memref<4x1xf32, #tpu.memory_space<vmem>>, %arg6: memref<1x1x4x1xf32, #tpu.memory_space<vmem>>, %arg7: memref<1x1x4x1xf32, #tpu.memory_space<vmem>>) attributes {dimension_semantics = [#tpu.dimension_semantics<parallel>, #tpu.dimension_semantics<parallel>], iteration_bounds = array<i64: 2, 1>, scalar_prefetch = 0 : i64, scratch_operands = 0 : i64, tpu.core_type = #tpu.core_type<tc>, window_params = [{transform_indices = @transform_0, window_bounds = array<i64: 1, 4, 256>}, {transform_indices = @transform_1, window_bounds = array<i64: 1, 1, 256>}, {pipeline_mode = #tpu.pipeline_mode<synchronous>, transform_indices = @transform_2, window_bounds = array<i64: 4, 4>}, {pipeline_mode = #tpu.pipeline_mode<synchronous>, transform_indices = @transform_3, window_bounds = array<i64: 4, 1>}, {transform_indices = @transform_4, window_bounds = array<i64: 1, 1, 4, 1>}, {transform_indices = @transform_5, window_bounds = array<i64: 1, 1, 4, 1>}]} {
    %c0 = arith.constant 0 : index
    %c0_0 = arith.constant 0 : index
    %c0_1 = arith.constant 0 : index
    %0 = vector.load %arg3[%c0, %c0_0, %c0_1] : memref<1x1x256xbf16, #tpu.memory_space<vmem>>, vector<1x1x256xbf16>
    %1 = vector.shape_cast %0 : vector<1x1x256xbf16> to vector<1x256xbf16>
    %c0_2 = arith.constant 0 : index
    %c0_3 = arith.constant 0 : index
    %c0_4 = arith.constant 0 : index
    %2 = vector.load %arg2[%c0_2, %c0_3, %c0_4] : memref<1x4x256xbf16, #tpu.memory_space<vmem>>, vector<1x4x256xbf16>
    %3 = vector.shape_cast %2 : vector<1x4x256xbf16> to vector<4x256xbf16>
    %4 = vector.broadcast %1 : vector<1x256xbf16> to vector<4x256xbf16>
    %5 = arith.mulf %4, %3 : vector<4x256xbf16>
    %c0_5 = arith.constant 0 : index
    %c0_6 = arith.constant 0 : index
    %6 = vector.load %arg4[%c0_5, %c0_6] : memref<4x4xbf16, #tpu.memory_space<vmem>>, vector<4x4xbf16>
    %cst = arith.constant dense<0.000000e+00> : vector<4x256xf32>
    %7 = tpu.matmul %6, %5, %cst {dimension_numbers = #tpu.dot_dimension_numbers<[1], [0], [0], [1], [0, 0, 1, 1], [], []>} : vector<4x4xbf16>, vector<4x256xbf16>, vector<4x256xf32> -> vector<4x256xf32>
    %c0_7 = arith.constant 0 : index
    %c0_8 = arith.constant 0 : index
    %8 = vector.load %arg5[%c0_7, %c0_8] : memref<4x1xf32, #tpu.memory_space<vmem>>, vector<4x1xf32>
    %9 = vector.broadcast %8 : vector<4x1xf32> to vector<4x256xf32>
    %10 = arith.addf %7, %9 : vector<4x256xf32>
    %cst_9 = arith.constant dense<0.000000e+00> : vector<4xf32>
    %11 = vector.multi_reduction <add>, %10, %cst_9 [1] : vector<4x256xf32> to vector<4xf32>
    %12 = vector.shape_cast %11 : vector<4xf32> to vector<4x1xf32>
    %c0_10 = arith.constant 0 : index
    %c0_11 = arith.constant 0 : index
    %c0_12 = arith.constant 0 : index
    %c0_13 = arith.constant 0 : index
    %13 = vector.load %arg6[%c0_10, %c0_11, %c0_12, %c0_13] : memref<1x1x4x1xf32, #tpu.memory_space<vmem>>, vector<1x1x4x1xf32>
    %14 = vector.shape_cast %13 : vector<1x1x4x1xf32> to vector<4x1xf32>
    %15 = vector.shape_cast %12 : vector<4x1xf32> to vector<1x1x4x1xf32>
    tpu.vector_store %arg6[%c0_10, %c0_11, %c0_12, %c0_13], %15 {strides = array<i32>} : memref<1x1x4x1xf32, #tpu.memory_space<vmem>>, vector<1x1x4x1xf32>,
    %16 = arith.mulf %10, %10 : vector<4x256xf32>
    %cst_14 = arith.constant dense<0.000000e+00> : vector<4xf32>
    %17 = vector.multi_reduction <add>, %16, %cst_14 [1] : vector<4x256xf32> to vector<4xf32>
    %18 = vector.shape_cast %17 : vector<4xf32> to vector<4x1xf32>
    %c0_15 = arith.constant 0 : index
    %c0_16 = arith.constant 0 : index
    %c0_17 = arith.constant 0 : index
    %c0_18 = arith.constant 0 : index
    %19 = vector.load %arg7[%c0_15, %c0_16, %c0_17, %c0_18] : memref<1x1x4x1xf32, #tpu.memory_space<vmem>>, vector<1x1x4x1xf32>
    %20 = vector.shape_cast %19 : vector<1x1x4x1xf32> to vector<4x1xf32>
    %21 = vector.shape_cast %18 : vector<4x1xf32> to vector<1x1x4x1xf32>
    tpu.vector_store %arg7[%c0_15, %c0_16, %c0_17, %c0_18], %21 {strides = array<i32>} : memref<1x1x4x1xf32, #tpu.memory_space<vmem>>, vector<1x1x4x1xf32>,
    return
  }
  func.func @transform_0(%arg0: i32, %arg1: i32) -> (i32, i32, i32) {
    %c0_i32 = arith.constant 0 : i32
    %c0_i32_0 = arith.constant 0 : i32
    return %arg0, %c0_i32, %arg1 : i32, i32, i32
  }
  func.func @transform_1(%arg0: i32, %arg1: i32) -> (i32, i32, i32) {
    %c0_i32 = arith.constant 0 : i32
    %c0_i32_0 = arith.constant 0 : i32
    return %arg0, %c0_i32, %arg1 : i32, i32, i32
  }
  func.func @transform_2(%arg0: i32, %arg1: i32) -> (i32, i32) {
    %c0_i32 = arith.constant 0 : i32
    %c0_i32_0 = arith.constant 0 : i32
    %c0_i32_1 = arith.constant 0 : i32
    return %c0_i32, %c0_i32_0 : i32, i32
  }
  func.func @transform_3(%arg0: i32, %arg1: i32) -> (i32, i32) {
    %c0_i32 = arith.constant 0 : i32
    %c0_i32_0 = arith.constant 0 : i32
    %c0_i32_1 = arith.constant 0 : i32
    return %c0_i32, %c0_i32_0 : i32, i32
  }
  func.func @transform_4(%arg0: i32, %arg1: i32) -> (i32, i32, i32, i32) {
    %c0_i32 = arith.constant 0 : i32
    %c0_i32_0 = arith.constant 0 : i32
    %c0_i32_1 = arith.constant 0 : i32
    return %arg0, %arg1, %c0_i32, %c0_i32_0 : i32, i32, i32, i32
  }
  func.func @transform_5(%arg0: i32, %arg1: i32) -> (i32, i32, i32, i32) {
    %c0_i32 = arith.constant 0 : i32
    %c0_i32_0 = arith.constant 0 : i32
    %c0_i32_1 = arith.constant 0 : i32
    return %arg0, %arg1, %c0_i32, %c0_i32_0 : i32, i32, i32, i32
  }
}

</mosaic_0001>

<llo_original>
// kernel: grid_attention_block_2d.3
$region0: #{grid_attention_block_2d.3}
  #allocation0 [shape = 'u32[]', space=smem, size = 0x4, offset = 0x4, fixed_abs, tag = 'smem constant byte address 0x4 - core index']
  #allocation1 [shape = 'u32[72,128]{1,0:T(1,128)}', space=vmem, size = 0x9000, scoped, tag = 'internal scratch']
  #allocation2 [shape = 'f32[1,1]{1,0:T(1,128)S(6)}', space=smem, size = 0x200, scoped, tag = 'scoped memory for grid_attention_block_2d.3']
  %s0 = inlined_call_operand.vmem [shape: bf16[2,16,64], index: 0, kind: input, shape index: {}]
  %s1 = inlined_call_operand.vmem [shape: bf16[2,2,64], index: 1, kind: input, shape index: {}]
  %s2 = inlined_call_operand.vmem [shape: bf16[2,16], index: 2, kind: input, shape index: {}]
  %s3 = inlined_call_operand.vmem [shape: f32[2,1], index: 3, kind: input, shape index: {}]
  %s4 = inlined_call_operand.vmem [shape: f32[2,1], index: 4, kind: input, shape index: {}]
  %s5 = inlined_call_operand.<no memory space> [shape: f32[1,1], index: 5, kind: input, shape index: {}]
  %s6 = inlined_call_operand.vmem [shape: f32[2,1,64], index: 6, kind: output, shape index: {}]
  %s7 = sld [smem:[#allocation0]]
  $region57: #{grid_attention_block_2d.3} parent=0
    _
  %s9 = ssub.s32 1, %s7
  %s10 = scalar_select 0, %s9, %s7
  %11 = sst [smem:[#allocation2]] %s5
  loop: start=0, step=1, limit=4
  $region2: #{grid_attention_block_2d.3} parent=0 // loop_pre_header
    _
  $region3: #{grid_attention_block_2d.3} parent=0 // loop_header
    %s13 = sphi 0, %s17
    %p14 = scmp.ge.s32.totalorder %s13, 4
    %s20 = sphi 0, %s32
    %s21 = sphi 0, %s28
    %s22 = sphi 0, %s20
    %s23 = sphi 0, %s21
    %s24 = sphi 0, %s22
    %s25 = sphi 0, %s23
    %s37 = sphi 0, %s39
    %s40 = sphi 0, %s37
    %s41 = sphi 0, %s40
    %s57 = sphi 0, %s41
    %s65 = sphi 0, %s67
    %s68 = sphi 0, %s65
    %s69 = sphi 0, %s68
    %s85 = sphi 0, %s69
    %s89 = sphi 0, %s89
    %s91 = sphi 0, %s89
    %s92 = sphi 0, %s91
    %s106 = sphi 0, %s92
    %s110 = sphi 0, %s110
    %s112 = sphi 0, %s110
    %s113 = sphi 0, %s112
    %s127 = sphi 0, %s113
    %s131 = sphi 0, %s131
    %s133 = sphi 0, %s131
    %s134 = sphi 0, %s133
    %s148 = sphi 0, %s134
    %s152 = sphi 0, %s152
    %s154 = sphi 0, %s152
    %s155 = sphi 0, %s154
    %s169 = sphi 0, %s155
    %s177 = sphi 0, %s179
    %s180 = sphi 0, %s177
    %s181 = sphi 0, %s180
    %s197 = sphi 0, %s181
  $region4: #{grid_attention_block_2d.3} parent=0 // loop_header_branch
    %16 = sbr.rel (%p14) target = $region8
  $region5: #{grid_attention_block_2d.3} parent=0 // loop_body
    %s18 = ssub.s32 %s13, 1
    %s19 = ssub.s32 %s13, 2
    %s26 = sadd.s32 1, %s21
    %p27 = scmp.ge.s32.totalorder %s26, 1
    %s28 = scalar_select %p27, 0, %s26
    %s29 = sadd.s32 1, %s20
    %s30 = scalar_select %p27, %s29, %s20
    %p31 = scmp.ge.s32.totalorder %s30, 2
    %s32 = scalar_select %p31, 0, %s30
    %s33 = ssub.s32 %s20, %s32
    %s34 = ssub.s32 %s21, %s28
    %s35 = sor.u32 %s33, %s34
    %p36 = scmp.eq.s32.totalorder %s35, 0
    %s38 = sadd.s32 %s37, 1
    %s39 = scalar_select %p36, %s37, %s38
    %p42 = pneg %p36
    %p43 = scmp.eq.s32.totalorder %s13, 1
    %p44 = por %p42, %p43
    %p45 = scmp.ne.s32.totalorder %s37, %s40
    %p46 = scmp.eq.s32.totalorder %s13, 0
    %p47 = por %p45, %p46
    %p48 = scmp.ne.s32.totalorder %s37, %s40
    %p49 = scmp.eq.s32.totalorder %s18, 1
    %p50 = por %p48, %p49
    %p51 = scmp.ne.s32.totalorder %s40, %s41
    %p52 = scmp.eq.s32.totalorder %s18, 0
    %p53 = por %p51, %p52
    %p54 = scmp.ne.s32.totalorder %s40, %s41
    %p55 = scmp.eq.s32.totalorder %s19, 1
    %p56 = por %p54, %p55
    %p58 = scmp.ne.s32.totalorder %s41, %s57
    %p59 = scmp.eq.s32.totalorder %s19, 0
    %p60 = por %p58, %p59
    %s61 = ssub.s32 %s20, %s32
    %s62 = ssub.s32 %s21, %s28
    %s63 = sor.u32 %s61, %s62
    %p64 = scmp.eq.s32.totalorder %s63, 0
    %s66 = sadd.s32 %s65, 1
    %s67 = scalar_select %p64, %s65, %s66
    %p70 = pneg %p64
    %p71 = scmp.eq.s32.totalorder %s13, 1
    %p72 = por %p70, %p71
    %p73 = scmp.ne.s32.totalorder %s65, %s68
    %p74 = scmp.eq.s32.totalorder %s13, 0
    %p75 = por %p73, %p74
    %p76 = scmp.ne.s32.totalorder %s65, %s68
    %p77 = scmp.eq.s32.totalorder %s18, 1
    %p78 = por %p76, %p77
    %p79 = scmp.ne.s32.totalorder %s68, %s69
    %p80 = scmp.eq.s32.totalorder %s18, 0
    %p81 = por %p79, %p80
    %p82 = scmp.ne.s32.totalorder %s68, %s69
    %p83 = scmp.eq.s32.totalorder %s19, 1
    %p84 = por %p82, %p83
    %p86 = scmp.ne.s32.totalorder %s69, %s85
    %p87 = scmp.eq.s32.totalorder %s19, 0
    %p88 = por %p86, %p87
    %s90 = sadd.s32 %s89, 1
    %p93 = scmp.eq.s32.totalorder %s13, 1
    %p94 = scmp.ne.s32.totalorder %s89, %s91
    %p95 = scmp.eq.s32.totalorder %s13, 0
    %p96 = por %p94, %p95
    %p97 = scmp.ne.s32.totalorder %s89, %s91
    %p98 = scmp.eq.s32.totalorder %s18, 1
    %p99 = por %p97, %p98
    %p100 = scmp.ne.s32.totalorder %s91, %s92
    %p101 = scmp.eq.s32.totalorder %s18, 0
    %p102 = por %p100, %p101
    %p103 = scmp.ne.s32.totalorder %s91, %s92
    %p104 = scmp.eq.s32.totalorder %s19, 1
    %p105 = por %p103, %p104
    %p107 = scmp.ne.s32.totalorder %s92, %s106
    %p108 = scmp.eq.s32.totalorder %s19, 0
    %p109 = por %p107, %p108
    %s111 = sadd.s32 %s110, 1
    %p114 = scmp.eq.s32.totalorder %s13, 1
    %p115 = scmp.ne.s32.totalorder %s110, %s112
    %p116 = scmp.eq.s32.totalorder %s13, 0
    %p117 = por %p115, %p116
    %p118 = scmp.ne.s32.totalorder %s110, %s112
    %p119 = scmp.eq.s32.totalorder %s18, 1
    %p120 = por %p118, %p119
    %p121 = scmp.ne.s32.totalorder %s112, %s113
    %p122 = scmp.eq.s32.totalorder %s18, 0
    %p123 = por %p121, %p122
    %p124 = scmp.ne.s32.totalorder %s112, %s113
    %p125 = scmp.eq.s32.totalorder %s19, 1
    %p126 = por %p124, %p125
    %p128 = scmp.ne.s32.totalorder %s113, %s127
    %p129 = scmp.eq.s32.totalorder %s19, 0
    %p130 = por %p128, %p129
    %s132 = sadd.s32 %s131, 1
    %p135 = scmp.eq.s32.totalorder %s13, 1
    %p136 = scmp.ne.s32.totalorder %s131, %s133
    %p137 = scmp.eq.s32.totalorder %s13, 0
    %p138 = por %p136, %p137
    %p139 = scmp.ne.s32.totalorder %s131, %s133
    %p140 = scmp.eq.s32.totalorder %s18, 1
    %p141 = por %p139, %p140
    %p142 = scmp.ne.s32.totalorder %s133, %s134
    %p143 = scmp.eq.s32.totalorder %s18, 0
    %p144 = por %p142, %p143
    %p145 = scmp.ne.s32.totalorder %s133, %s134
    %p146 = scmp.eq.s32.totalorder %s19, 1
    %p147 = por %p145, %p146
    %p149 = scmp.ne.s32.totalorder %s134, %s148
    %p150 = scmp.eq.s32.totalorder %s19, 0
    %p151 = por %p149, %p150
    %s153 = sadd.s32 %s152, 1
    %p156 = scmp.eq.s32.totalorder %s13, 1
    %p157 = scmp.ne.s32.totalorder %s152, %s154
    %p158 = scmp.eq.s32.totalorder %s13, 0
    %p159 = por %p157, %p158
    %p160 = scmp.ne.s32.totalorder %s152, %s154
    %p161 = scmp.eq.s32.totalorder %s18, 1
    %p162 = por %p160, %p161
    %p163 = scmp.ne.s32.totalorder %s154, %s155
    %p164 = scmp.eq.s32.totalorder %s18, 0
    %p165 = por %p163, %p164
    %p166 = scmp.ne.s32.totalorder %s154, %s155
    %p167 = scmp.eq.s32.totalorder %s19, 1
    %p168 = por %p166, %p167
    %p170 = scmp.ne.s32.totalorder %s155, %s169
    %p171 = scmp.eq.s32.totalorder %s19, 0
    %p172 = por %p170, %p171
    %s173 = ssub.s32 %s20, %s32
    %s174 = ssub.s32 %s21, %s28
    %s175 = sor.u32 %s173, %s174
    %p176 = scmp.eq.s32.totalorder %s175, 0
    %s178 = sadd.s32 %s177, 1
    %s179 = scalar_select %p176, %s177, %s178
    %p182 = pneg %p176
    %p183 = scmp.eq.s32.totalorder %s13, 1
    %p184 = por %p182, %p183
    %p185 = scmp.ne.s32.totalorder %s177, %s180
    %p186 = scmp.eq.s32.totalorder %s13, 0
    %p187 = por %p185, %p186
    %p188 = scmp.ne.s32.totalorder %s177, %s180
    %p189 = scmp.eq.s32.totalorder %s18, 1
    %p190 = por %p188, %p189
    %p191 = scmp.ne.s32.totalorder %s180, %s181
    %p192 = scmp.eq.s32.totalorder %s18, 0
    %p193 = por %p191, %p192
    %p194 = scmp.ne.s32.totalorder %s180, %s181
    %p195 = scmp.eq.s32.totalorder %s19, 1
    %p196 = por %p194, %p195
    %p198 = scmp.ne.s32.totalorder %s181, %s197
    %p199 = scmp.eq.s32.totalorder %s19, 0
    %p200 = por %p198, %p199
    %p201 = scmp.le.s32.totalorder 1, %s13
    %p202 = scmp.lt.s32.totalorder %s13, 3
    %p203 = pnand %p201, %p202
    %p204 = pneg %p203
    // Predicated region
    $region9: #{grid_attention_block_2d.3} parent=5 // pred_check
      _
    $region10: #{grid_attention_block_2d.3} parent=5 // pred_check_branch
      %206 = sbr.rel (%p203) target = $region12
    $region11: #{grid_attention_block_2d.3} parent=5 // pred_region
      %s207 = ssub.s32 %s13, 1
      // Predicated region
      $region13: #{grid_attention_block_2d.3} parent=11 // pred_check
        %p208 = pneg %p102
      $region14: #{grid_attention_block_2d.3} parent=11 // pred_check_branch
        %210 = sbr.rel (%p208) target = $region16
      $region15: #{grid_attention_block_2d.3} parent=11 // pred_region
        _
      $region16: #{grid_attention_block_2d.3} parent=11 // pred_fallthru
        _
      // Predicated region
      $region17: #{grid_attention_block_2d.3} parent=11 // pred_check
        %p211 = pneg %p123
      $region18: #{grid_attention_block_2d.3} parent=11 // pred_check_branch
        %213 = sbr.rel (%p211) target = $region20
      $region19: #{grid_attention_block_2d.3} parent=11 // pred_region
        _
      $region20: #{grid_attention_block_2d.3} parent=11 // pred_fallthru
        _
      // Predicated region
      $region21: #{grid_attention_block_2d.3} parent=11 // pred_check
        %p214 = pneg %p144
      $region22: #{grid_attention_block_2d.3} parent=11 // pred_check_branch
        %216 = sbr.rel (%p214) target = $region24
      $region23: #{grid_attention_block_2d.3} parent=11 // pred_region
        _
      $region24: #{grid_attention_block_2d.3} parent=11 // pred_fallthru
        _
      // Predicated region
      $region25: #{grid_attention_block_2d.3} parent=11 // pred_check
        %p217 = pneg %p165
      $region26: #{grid_attention_block_2d.3} parent=11 // pred_check_branch
        %219 = sbr.rel (%p217) target = $region28
      $region27: #{grid_attention_block_2d.3} parent=11 // pred_region
        _
      $region28: #{grid_attention_block_2d.3} parent=11 // pred_fallthru
        _
    $region12: #{grid_attention_block_2d.3} parent=5 // pred_fallthru
      _
    %p220 = scmp.lt.s32.totalorder %s13, 2
    // Predicated region
    $region29: #{grid_attention_block_2d.3} parent=5 // pred_check
      %p221 = pneg %p220
    $region30: #{grid_attention_block_2d.3} parent=5 // pred_check_branch
      %223 = sbr.rel (%p221) target = $region32
    $region31: #{grid_attention_block_2d.3} parent=5 // pred_region
      // Predicated region
      $region33: #{grid_attention_block_2d.3} parent=31 // pred_check
        %p224 = pneg %p47
      $region34: #{grid_attention_block_2d.3} parent=31 // pred_check_branch
        %226 = sbr.rel (%p224) target = $region36
      $region35: #{grid_attention_block_2d.3} parent=31 // pred_region
        %p227 = scmp.lt.s32.totalorder %s20, 1
        %s228 = scalar_select %p227, %s20, 1
        %p229 = scmp.lt.s32.totalorder %s21, 0
        %s230 = scalar_select %p229, %s21, 0
        %s231 = smul.addr %s228, 2
        %s232 = sadd.s32 %s230, %s231
        %s233 = smul.addr %s232, 4
        %s234 = scalar_lea.vmem %s0, %s233
      $region36: #{grid_attention_block_2d.3} parent=31 // pred_fallthru
        _
      // Predicated region
      $region37: #{grid_attention_block_2d.3} parent=31 // pred_check
        %p235 = pneg %p75
      $region38: #{grid_attention_block_2d.3} parent=31 // pred_check_branch
        %237 = sbr.rel (%p235) target = $region40
      $region39: #{grid_attention_block_2d.3} parent=31 // pred_region
        %p238 = scmp.lt.s32.totalorder %s20, 1
        %s239 = scalar_select %p238, %s20, 1
        %p240 = scmp.lt.s32.totalorder %s21, 0
        %s241 = scalar_select %p240, %s21, 0
        %s242 = sadd.s32 %s241, %s239
        %s243 = scalar_lea.vmem %s1, %s242
      $region40: #{grid_attention_block_2d.3} parent=31 // pred_fallthru
        _
    $region32: #{grid_attention_block_2d.3} parent=5 // pred_fallthru
      _
    %p244 = scmp.le.s32.totalorder 1, %s13
    %p245 = scmp.lt.s32.totalorder %s13, 3
    %p246 = pnand %p244, %p245
    %p247 = pneg %p246
    // Predicated region
    $region41: #{grid_attention_block_2d.3} parent=5 // pred_check
      _
    $region42: #{grid_attention_block_2d.3} parent=5 // pred_check_branch
      %249 = sbr.rel (%p246) target = $region44
    $region43: #{grid_attention_block_2d.3} parent=5 // pred_region
      %s250 = ssub.s32 %s13, 1
      %p251 = scmp.lt.s32.totalorder %s22, 1
      %s252 = scalar_select %p251, %s22, 1
      %p253 = scmp.lt.s32.totalorder %s23, 0
      %s254 = scalar_select %p253, %s23, 0
      %s255 = smul.addr %s252, 2
      %s256 = sadd.s32 %s254, %s255
      %s257 = smul.addr %s256, 4
      %s258 = scalar_lea.vmem %s0, %s257
      %p259 = pneg %p53
      %p260 = pneg %p50
      %p261 = scmp.lt.s32.totalorder %s22, 1
      %s262 = scalar_select %p261, %s22, 1
      %p263 = scmp.lt.s32.totalorder %s23, 0
      %s264 = scalar_select %p263, %s23, 0
      %s265 = sadd.s32 %s264, %s262
      %s266 = scalar_lea.vmem %s1, %s265
      %p267 = pneg %p81
      %p268 = pneg %p78
      %p269 = pneg %p102
      %p270 = pneg %p99
      %p271 = pneg %p123
      %p272 = pneg %p120
      %p273 = pneg %p144
      %p274 = pneg %p141
      %p275 = pneg %p165
      %p276 = pneg %p162
      %p277 = pneg %p193
      %p278 = pneg %p190
      %p279 = scmp.lt.s32.totalorder %s22, 1
      %s280 = scalar_select %p279, %s22, 1
      %p281 = scmp.lt.s32.totalorder %s23, 0
      %s282 = scalar_select %p281, %s23, 0
      %s283 = sadd.s32 %s282, %s280
      %s284 = scalar_lea.vmem %s6, %s283
      %p285 = scmp.lt.s32.totalorder %s22, 1
      %s286 = scalar_select %p285, %s22, 1
      %p287 = scmp.lt.s32.totalorder %s23, 0
      %s288 = scalar_select %p287, %s23, 0
      %s289 = smul.addr %s286, 2
      %s290 = sadd.s32 %s288, %s289
      %s291 = smul.addr %s290, 4
      %s292 = scalar_lea.vmem %s0, %s291
      %p293 = scmp.lt.s32.totalorder %s22, 1
      %s294 = scalar_select %p293, %s22, 1
      %p295 = scmp.lt.s32.totalorder %s23, 0
      %s296 = scalar_select %p295, %s23, 0
      %s297 = sadd.s32 %s296, %s294
      %s298 = scalar_lea.vmem %s1, %s297
      %p299 = scmp.lt.s32.totalorder %s22, 1
      %s300 = scalar_select %p299, %s22, 1
      %p301 = scmp.lt.s32.totalorder %s23, 0
      %s302 = scalar_select %p301, %s23, 0
      %s303 = sadd.s32 %s302, %s300
      %s304 = scalar_lea.vmem %s6, %s303
      %v306 = vld [vmem:[%s2] sm:$0x1]
      %v307 = vld [vmem:[%s292] sm:$0xf]
      %v308 = vld [vmem:[%s292 + $0x4] sm:$0xf]
      %v309 = vld [vmem:[%s3] sm:$0x3]
      %311 = vset.pattern.permute.xlu0 0
      %312 = vperm.xlu0 %311, %v309
      %v313 = vpop.permute.xlu0 %312
      %v317 = vunpack.c.l.b16 %v307
      %v318 = vunpack.c.l.b16 %v308
      %v319 = vpack.c.b16 %v318, %v317
      %vm321 = vcmask 130048
      %v323 = vsel %vm321, %v306, 0
      %325 = vmatpush.bf16.msra.mxu0 0
      %326 = vmatpush.bf16.msra.mxu0 0
      %327 = vmatpush.bf16.msra.mxu0 0
      %328 = vmatpush.bf16.msra.mxu0 0
      %329 = vmatpush.bf16.msra.mxu0 0
      %330 = vmatpush.bf16.msra.mxu0 0
      %331 = vmatpush.bf16.msra.mxu0 0
      %332 = vmatpush.bf16.msra.mxu0 %v319
      %333 = vmatmul.bf16.gmra.mxu0 %v323
      %v334 = vpop.f32.mrf.mxu0
      %v335 = vadd.f32 %v313, %v334
      %v336 = vpop.f32.mrf.mxu0
      %337 = vdwg.mxu0
      %v338 = vld [vmem:[%s298] sm:$0x1]
      %v339 = vunpack.c.l.bf16 %v338
      %v340 = vadd.f32 %v335, %v339
      %v341 = vmax.f32 %v340, 0.0
      %v342 = vld [vmem:[%s4] sm:$0x3]
      %344 = vset.pattern.permute.xlu0 0
      %345 = vperm.xlu0 %344, %v342
      %v346 = vpop.permute.xlu0 %345
      %v348 = vmul.f32 %v341, %v346
      %vm349 = vcmask 517120
      %v350 = vsel %vm349, %v348, 0.0
      %v351 = vrot.slane %v350, 4
      %v352 = vadd.f32 %v350, %v351
      %v353 = vrot.slane %v352, 2
      %v354 = vadd.f32 %v352, %v353
      %v355 = vrot.slane %v354, 1
      %v356 = vadd.f32 %v354, %v355
      %s357 = sld [smem:[#allocation2]]
      %v358 = vstv %s357
      %v359 = vadd.f32 %v356, %v358
      %v360 = vsub.f32 0.0, %v359
      %v361 = vmul.f32 %v360, 1.442695
      %v362 = vpow.pop %v361
      %v363 = vadd.f32 %v362, 1.0
      %v364 = vrcp.pop %v363
      %v365 = vmul.f32 %v363, %v364
      %v366 = vsub.f32 1.0, %v365
      %v367 = vmul.f32 %v364, %v366
      %v368 = vadd.f32 %v364, %v367
      %vm369 = vweird.f32 %v363
      %vm370 = vweird.f32 %v364
      %vm371 = vmor %vm369, %vm370
      %v372 = vsel %vm371, %v364, %v368
      %v373 = vand.u32 2147483647, %v363
      %vm374 = vcmp.eq.f32.partialorder %v373, 8.507059e+37
      %v375 = vand.u32 %v363, 2147483648
      %v376 = vor.u32 1.1754944e-38, %v375
      %v377 = vsel %vm374, %v376, %v372
      %v378 = vmul.f32 1.0, %v377
      %vm379 = vcmask 516096
      %380 = vst.msk [vmem:[%s304] sm:$0x1] %vm379, %v378
      %p381 = scmp.lt.s32.totalorder %s22, 1
      %s382 = scalar_select %p381, %s22, 1
      %p383 = scmp.lt.s32.totalorder %s23, 0
      %s384 = scalar_select %p383, %s23, 0
      %s385 = sadd.s32 %s384, %s382
      %s386 = scalar_lea.vmem %s6, %s385
      // Predicated region
      $region45: #{grid_attention_block_2d.3} parent=43 // pred_check
        %p387 = pneg %p190
      $region46: #{grid_attention_block_2d.3} parent=43 // pred_check_branch
        %389 = sbr.rel (%p387) target = $region48
      $region47: #{grid_attention_block_2d.3} parent=43 // pred_region
        _
      $region48: #{grid_attention_block_2d.3} parent=43 // pred_fallthru
        _
    $region44: #{grid_attention_block_2d.3} parent=5 // pred_fallthru
      _
    %p390 = scmp.le.s32.totalorder 2, %s13
    // Predicated region
    $region49: #{grid_attention_block_2d.3} parent=5 // pred_check
      %p391 = pneg %p390
    $region50: #{grid_attention_block_2d.3} parent=5 // pred_check_branch
      %393 = sbr.rel (%p391) target = $region52
    $region51: #{grid_attention_block_2d.3} parent=5 // pred_region
      %s394 = ssub.s32 %s13, 2
      // Predicated region
      $region53: #{grid_attention_block_2d.3} parent=51 // pred_check
        %p395 = pneg %p196
      $region54: #{grid_attention_block_2d.3} parent=51 // pred_check_branch
        %397 = sbr.rel (%p395) target = $region56
      $region55: #{grid_attention_block_2d.3} parent=51 // pred_region
        %p398 = scmp.lt.s32.totalorder %s24, 1
        %s399 = scalar_select %p398, %s24, 1
        %p400 = scmp.lt.s32.totalorder %s25, 0
        %s401 = scalar_select %p400, %s25, 0
        %s402 = sadd.s32 %s401, %s399
        %s403 = scalar_lea.vmem %s6, %s402
      $region56: #{grid_attention_block_2d.3} parent=51 // pred_fallthru
        _
    $region52: #{grid_attention_block_2d.3} parent=5 // pred_fallthru
      _
  $region6: #{grid_attention_block_2d.3} parent=0 // loop_footer
    %s17 = sadd.s32 1, %s13
  $region7: #{grid_attention_block_2d.3} parent=0 // loop_footer_branch
    %12 = sbr.rel target = $region3
  $region8: #{grid_attention_block_2d.3} parent=0 // loop_exit
    _

// kernel: grid_attention_block_2d.5
$region0: #{grid_attention_block_2d.5}
  #allocation0 [shape = 'u32[]', space=smem, size = 0x4, offset = 0x4, fixed_abs, tag = 'smem constant byte address 0x4 - core index']
  #allocation1 [shape = 'u32[72,128]{1,0:T(1,128)}', space=vmem, size = 0x9000, scoped, tag = 'internal scratch']
  %s0 = inlined_call_operand.vmem [shape: bf16[2,4,256], index: 0, kind: input, shape index: {}]
  %s1 = inlined_call_operand.vmem [shape: bf16[2,1,256], index: 1, kind: input, shape index: {}]
  %s2 = inlined_call_operand.vmem [shape: bf16[4,4], index: 2, kind: input, shape index: {}]
  %s3 = inlined_call_operand.vmem [shape: f32[4,1], index: 3, kind: input, shape index: {}]
  %s4 = inlined_call_operand.vmem [shape: f32[4,1], index: 4, kind: input, shape index: {}]
  %s5 = inlined_call_operand.vmem [shape: f32[4,1], index: 5, kind: input, shape index: {}]
  %s6 = inlined_call_operand.vmem [shape: f32[2,4,256], index: 6, kind: output, shape index: {}]
  %s7 = sld [smem:[#allocation0]]
  $region57: #{grid_attention_block_2d.5} parent=0
    _
  %s9 = ssub.s32 1, %s7
  %s10 = scalar_select 0, %s9, %s7
  loop: start=0, step=1, limit=4
  $region2: #{grid_attention_block_2d.5} parent=0 // loop_pre_header
    _
  $region3: #{grid_attention_block_2d.5} parent=0 // loop_header
    %s12 = sphi 0, %s16
    %p13 = scmp.ge.s32.totalorder %s12, 4
    %s19 = sphi 0, %s31
    %s20 = sphi 0, %s27
    %s21 = sphi 0, %s19
    %s22 = sphi 0, %s20
    %s23 = sphi 0, %s21
    %s24 = sphi 0, %s22
    %s36 = sphi 0, %s38
    %s39 = sphi 0, %s36
    %s40 = sphi 0, %s39
    %s56 = sphi 0, %s40
    %s64 = sphi 0, %s66
    %s67 = sphi 0, %s64
    %s68 = sphi 0, %s67
    %s84 = sphi 0, %s68
    %s88 = sphi 0, %s88
    %s90 = sphi 0, %s88
    %s91 = sphi 0, %s90
    %s105 = sphi 0, %s91
    %s109 = sphi 0, %s109
    %s111 = sphi 0, %s109
    %s112 = sphi 0, %s111
    %s126 = sphi 0, %s112
    %s130 = sphi 0, %s130
    %s132 = sphi 0, %s130
    %s133 = sphi 0, %s132
    %s147 = sphi 0, %s133
    %s151 = sphi 0, %s151
    %s153 = sphi 0, %s151
    %s154 = sphi 0, %s153
    %s168 = sphi 0, %s154
    %s176 = sphi 0, %s178
    %s179 = sphi 0, %s176
    %s180 = sphi 0, %s179
    %s196 = sphi 0, %s180
  $region4: #{grid_attention_block_2d.5} parent=0 // loop_header_branch
    %15 = sbr.rel (%p13) target = $region8
  $region5: #{grid_attention_block_2d.5} parent=0 // loop_body
    %s17 = ssub.s32 %s12, 1
    %s18 = ssub.s32 %s12, 2
    %s25 = sadd.s32 1, %s20
    %p26 = scmp.ge.s32.totalorder %s25, 1
    %s27 = scalar_select %p26, 0, %s25
    %s28 = sadd.s32 1, %s19
    %s29 = scalar_select %p26, %s28, %s19
    %p30 = scmp.ge.s32.totalorder %s29, 2
    %s31 = scalar_select %p30, 0, %s29
    %s32 = ssub.s32 %s19, %s31
    %s33 = ssub.s32 %s20, %s27
    %s34 = sor.u32 %s32, %s33
    %p35 = scmp.eq.s32.totalorder %s34, 0
    %s37 = sadd.s32 %s36, 1
    %s38 = scalar_select %p35, %s36, %s37
    %p41 = pneg %p35
    %p42 = scmp.eq.s32.totalorder %s12, 1
    %p43 = por %p41, %p42
    %p44 = scmp.ne.s32.totalorder %s36, %s39
    %p45 = scmp.eq.s32.totalorder %s12, 0
    %p46 = por %p44, %p45
    %p47 = scmp.ne.s32.totalorder %s36, %s39
    %p48 = scmp.eq.s32.totalorder %s17, 1
    %p49 = por %p47, %p48
    %p50 = scmp.ne.s32.totalorder %s39, %s40
    %p51 = scmp.eq.s32.totalorder %s17, 0
    %p52 = por %p50, %p51
    %p53 = scmp.ne.s32.totalorder %s39, %s40
    %p54 = scmp.eq.s32.totalorder %s18, 1
    %p55 = por %p53, %p54
    %p57 = scmp.ne.s32.totalorder %s40, %s56
    %p58 = scmp.eq.s32.totalorder %s18, 0
    %p59 = por %p57, %p58
    %s60 = ssub.s32 %s19, %s31
    %s61 = ssub.s32 %s20, %s27
    %s62 = sor.u32 %s60, %s61
    %p63 = scmp.eq.s32.totalorder %s62, 0
    %s65 = sadd.s32 %s64, 1
    %s66 = scalar_select %p63, %s64, %s65
    %p69 = pneg %p63
    %p70 = scmp.eq.s32.totalorder %s12, 1
    %p71 = por %p69, %p70
    %p72 = scmp.ne.s32.totalorder %s64, %s67
    %p73 = scmp.eq.s32.totalorder %s12, 0
    %p74 = por %p72, %p73
    %p75 = scmp.ne.s32.totalorder %s64, %s67
    %p76 = scmp.eq.s32.totalorder %s17, 1
    %p77 = por %p75, %p76
    %p78 = scmp.ne.s32.totalorder %s67, %s68
    %p79 = scmp.eq.s32.totalorder %s17, 0
    %p80 = por %p78, %p79
    %p81 = scmp.ne.s32.totalorder %s67, %s68
    %p82 = scmp.eq.s32.totalorder %s18, 1
    %p83 = por %p81, %p82
    %p85 = scmp.ne.s32.totalorder %s68, %s84
    %p86 = scmp.eq.s32.totalorder %s18, 0
    %p87 = por %p85, %p86
    %s89 = sadd.s32 %s88, 1
    %p92 = scmp.eq.s32.totalorder %s12, 1
    %p93 = scmp.ne.s32.totalorder %s88, %s90
    %p94 = scmp.eq.s32.totalorder %s12, 0
    %p95 = por %p93, %p94
    %p96 = scmp.ne.s32.totalorder %s88, %s90
    %p97 = scmp.eq.s32.totalorder %s17, 1
    %p98 = por %p96, %p97
    %p99 = scmp.ne.s32.totalorder %s90, %s91
    %p100 = scmp.eq.s32.totalorder %s17, 0
    %p101 = por %p99, %p100
    %p102 = scmp.ne.s32.totalorder %s90, %s91
    %p103 = scmp.eq.s32.totalorder %s18, 1
    %p104 = por %p102, %p103
    %p106 = scmp.ne.s32.totalorder %s91, %s105
    %p107 = scmp.eq.s32.totalorder %s18, 0
    %p108 = por %p106, %p107
    %s110 = sadd.s32 %s109, 1
    %p113 = scmp.eq.s32.totalorder %s12, 1
    %p114 = scmp.ne.s32.totalorder %s109, %s111
    %p115 = scmp.eq.s32.totalorder %s12, 0
    %p116 = por %p114, %p115
    %p117 = scmp.ne.s32.totalorder %s109, %s111
    %p118 = scmp.eq.s32.totalorder %s17, 1
    %p119 = por %p117, %p118
    %p120 = scmp.ne.s32.totalorder %s111, %s112
    %p121 = scmp.eq.s32.totalorder %s17, 0
    %p122 = por %p120, %p121
    %p123 = scmp.ne.s32.totalorder %s111, %s112
    %p124 = scmp.eq.s32.totalorder %s18, 1
    %p125 = por %p123, %p124
    %p127 = scmp.ne.s32.totalorder %s112, %s126
    %p128 = scmp.eq.s32.totalorder %s18, 0
    %p129 = por %p127, %p128
    %s131 = sadd.s32 %s130, 1
    %p134 = scmp.eq.s32.totalorder %s12, 1
    %p135 = scmp.ne.s32.totalorder %s130, %s132
    %p136 = scmp.eq.s32.totalorder %s12, 0
    %p137 = por %p135, %p136
    %p138 = scmp.ne.s32.totalorder %s130, %s132
    %p139 = scmp.eq.s32.totalorder %s17, 1
    %p140 = por %p138, %p139
    %p141 = scmp.ne.s32.totalorder %s132, %s133
    %p142 = scmp.eq.s32.totalorder %s17, 0
    %p143 = por %p141, %p142
    %p144 = scmp.ne.s32.totalorder %s132, %s133
    %p145 = scmp.eq.s32.totalorder %s18, 1
    %p146 = por %p144, %p145
    %p148 = scmp.ne.s32.totalorder %s133, %s147
    %p149 = scmp.eq.s32.totalorder %s18, 0
    %p150 = por %p148, %p149
    %s152 = sadd.s32 %s151, 1
    %p155 = scmp.eq.s32.totalorder %s12, 1
    %p156 = scmp.ne.s32.totalorder %s151, %s153
    %p157 = scmp.eq.s32.totalorder %s12, 0
    %p158 = por %p156, %p157
    %p159 = scmp.ne.s32.totalorder %s151, %s153
    %p160 = scmp.eq.s32.totalorder %s17, 1
    %p161 = por %p159, %p160
    %p162 = scmp.ne.s32.totalorder %s153, %s154
    %p163 = scmp.eq.s32.totalorder %s17, 0
    %p164 = por %p162, %p163
    %p165 = scmp.ne.s32.totalorder %s153, %s154
    %p166 = scmp.eq.s32.totalorder %s18, 1
    %p167 = por %p165, %p166
    %p169 = scmp.ne.s32.totalorder %s154, %s168
    %p170 = scmp.eq.s32.totalorder %s18, 0
    %p171 = por %p169, %p170
    %s172 = ssub.s32 %s19, %s31
    %s173 = ssub.s32 %s20, %s27
    %s174 = sor.u32 %s172, %s173
    %p175 = scmp.eq.s32.totalorder %s174, 0
    %s177 = sadd.s32 %s176, 1
    %s178 = scalar_select %p175, %s176, %s177
    %p181 = pneg %p175
    %p182 = scmp.eq.s32.totalorder %s12, 1
    %p183 = por %p181, %p182
    %p184 = scmp.ne.s32.totalorder %s176, %s179
    %p185 = scmp.eq.s32.totalorder %s12, 0
    %p186 = por %p184, %p185
    %p187 = scmp.ne.s32.totalorder %s176, %s179
    %p188 = scmp.eq.s32.totalorder %s17, 1
    %p189 = por %p187, %p188
    %p190 = scmp.ne.s32.totalorder %s179, %s180
    %p191 = scmp.eq.s32.totalorder %s17, 0
    %p192 = por %p190, %p191
    %p193 = scmp.ne.s32.totalorder %s179, %s180
    %p194 = scmp.eq.s32.totalorder %s18, 1
    %p195 = por %p193, %p194
    %p197 = scmp.ne.s32.totalorder %s180, %s196
    %p198 = scmp.eq.s32.totalorder %s18, 0
    %p199 = por %p197, %p198
    %p200 = scmp.le.s32.totalorder 1, %s12
    %p201 = scmp.lt.s32.totalorder %s12, 3
    %p202 = pnand %p200, %p201
    %p203 = pneg %p202
    // Predicated region
    $region9: #{grid_attention_block_2d.5} parent=5 // pred_check
      _
    $region10: #{grid_attention_block_2d.5} parent=5 // pred_check_branch
      %205 = sbr.rel (%p202) target = $region12
    $region11: #{grid_attention_block_2d.5} parent=5 // pred_region
      %s206 = ssub.s32 %s12, 1
      // Predicated region
      $region13: #{grid_attention_block_2d.5} parent=11 // pred_check
        %p207 = pneg %p101
      $region14: #{grid_attention_block_2d.5} parent=11 // pred_check_branch
        %209 = sbr.rel (%p207) target = $region16
      $region15: #{grid_attention_block_2d.5} parent=11 // pred_region
        _
      $region16: #{grid_attention_block_2d.5} parent=11 // pred_fallthru
        _
      // Predicated region
      $region17: #{grid_attention_block_2d.5} parent=11 // pred_check
        %p210 = pneg %p122
      $region18: #{grid_attention_block_2d.5} parent=11 // pred_check_branch
        %212 = sbr.rel (%p210) target = $region20
      $region19: #{grid_attention_block_2d.5} parent=11 // pred_region
        _
      $region20: #{grid_attention_block_2d.5} parent=11 // pred_fallthru
        _
      // Predicated region
      $region21: #{grid_attention_block_2d.5} parent=11 // pred_check
        %p213 = pneg %p143
      $region22: #{grid_attention_block_2d.5} parent=11 // pred_check_branch
        %215 = sbr.rel (%p213) target = $region24
      $region23: #{grid_attention_block_2d.5} parent=11 // pred_region
        _
      $region24: #{grid_attention_block_2d.5} parent=11 // pred_fallthru
        _
      // Predicated region
      $region25: #{grid_attention_block_2d.5} parent=11 // pred_check
        %p216 = pneg %p164
      $region26: #{grid_attention_block_2d.5} parent=11 // pred_check_branch
        %218 = sbr.rel (%p216) target = $region28
      $region27: #{grid_attention_block_2d.5} parent=11 // pred_region
        _
      $region28: #{grid_attention_block_2d.5} parent=11 // pred_fallthru
        _
    $region12: #{grid_attention_block_2d.5} parent=5 // pred_fallthru
      _
    %p219 = scmp.lt.s32.totalorder %s12, 2
    // Predicated region
    $region29: #{grid_attention_block_2d.5} parent=5 // pred_check
      %p220 = pneg %p219
    $region30: #{grid_attention_block_2d.5} parent=5 // pred_check_branch
      %222 = sbr.rel (%p220) target = $region32
    $region31: #{grid_attention_block_2d.5} parent=5 // pred_region
      // Predicated region
      $region33: #{grid_attention_block_2d.5} parent=31 // pred_check
        %p223 = pneg %p46
      $region34: #{grid_attention_block_2d.5} parent=31 // pred_check_branch
        %225 = sbr.rel (%p223) target = $region36
      $region35: #{grid_attention_block_2d.5} parent=31 // pred_region
        %s226 = smul.u32 2, %s20
        %p227 = scmp.lt.s32.totalorder %s19, 1
        %s228 = scalar_select %p227, %s19, 1
        %p229 = scmp.lt.s32.totalorder %s226, 1
        %s230 = scalar_select %p229, %s226, 1
        %s231 = smul.addr %s228, 2
        %s232 = sadd.s32 %s230, %s231
        %s233 = smul.addr %s232, 2
        %s234 = scalar_lea.vmem %s0, %s233
        %s235 = smul.u32 2, %s20
      $region36: #{grid_attention_block_2d.5} parent=31 // pred_fallthru
        _
      // Predicated region
      $region37: #{grid_attention_block_2d.5} parent=31 // pred_check
        %p236 = pneg %p74
      $region38: #{grid_attention_block_2d.5} parent=31 // pred_check_branch
        %238 = sbr.rel (%p236) target = $region40
      $region39: #{grid_attention_block_2d.5} parent=31 // pred_region
        %s239 = smul.u32 2, %s20
        %p240 = scmp.lt.s32.totalorder %s19, 1
        %s241 = scalar_select %p240, %s19, 1
        %p242 = scmp.lt.s32.totalorder %s239, 1
        %s243 = scalar_select %p242, %s239, 1
        %s244 = smul.addr %s241, 2
        %s245 = sadd.s32 %s243, %s244
        %s246 = scalar_lea.vmem %s1, %s245
        %s247 = smul.u32 2, %s20
      $region40: #{grid_attention_block_2d.5} parent=31 // pred_fallthru
        _
    $region32: #{grid_attention_block_2d.5} parent=5 // pred_fallthru
      _
    %p248 = scmp.le.s32.totalorder 1, %s12
    %p249 = scmp.lt.s32.totalorder %s12, 3
    %p250 = pnand %p248, %p249
    %p251 = pneg %p250
    // Predicated region
    $region41: #{grid_attention_block_2d.5} parent=5 // pred_check
      _
    $region42: #{grid_attention_block_2d.5} parent=5 // pred_check_branch
      %253 = sbr.rel (%p250) target = $region44
    $region43: #{grid_attention_block_2d.5} parent=5 // pred_region
      %s254 = ssub.s32 %s12, 1
      %s255 = smul.u32 2, %s22
      %p256 = scmp.lt.s32.totalorder %s21, 1
      %s257 = scalar_select %p256, %s21, 1
      %p258 = scmp.lt.s32.totalorder %s255, 1
      %s259 = scalar_select %p258, %s255, 1
      %s260 = smul.addr %s257, 2
      %s261 = sadd.s32 %s259, %s260
      %s262 = smul.addr %s261, 2
      %s263 = scalar_lea.vmem %s0, %s262
      %p264 = pneg %p52
      %p265 = pneg %p49
      %s266 = smul.u32 2, %s22
      %p267 = scmp.lt.s32.totalorder %s21, 1
      %s268 = scalar_select %p267, %s21, 1
      %p269 = scmp.lt.s32.totalorder %s266, 1
      %s270 = scalar_select %p269, %s266, 1
      %s271 = smul.addr %s268, 2
      %s272 = sadd.s32 %s270, %s271
      %s273 = scalar_lea.vmem %s1, %s272
      %p274 = pneg %p80
      %p275 = pneg %p77
      %p276 = pneg %p101
      %p277 = pneg %p98
      %p278 = pneg %p122
      %p279 = pneg %p119
      %p280 = pneg %p143
      %p281 = pneg %p140
      %p282 = pneg %p164
      %p283 = pneg %p161
      %p284 = pneg %p192
      %p285 = pneg %p189
      %s286 = smul.u32 2, %s22
      %p287 = scmp.lt.s32.totalorder %s21, 1
      %s288 = scalar_select %p287, %s21, 1
      %p289 = scmp.lt.s32.totalorder %s286, 1
      %s290 = scalar_select %p289, %s286, 1
      %s291 = smul.addr %s288, 2
      %s292 = sadd.s32 %s290, %s291
      %s293 = smul.addr %s292, 4
      %s294 = scalar_lea.vmem %s6, %s293
      %s295 = smul.u32 2, %s22
      %p296 = scmp.lt.s32.totalorder %s21, 1
      %s297 = scalar_select %p296, %s21, 1
      %p298 = scmp.lt.s32.totalorder %s295, 1
      %s299 = scalar_select %p298, %s295, 1
      %s300 = smul.addr %s297, 2
      %s301 = sadd.s32 %s299, %s300
      %s302 = smul.addr %s301, 2
      %s303 = scalar_lea.vmem %s0, %s302
      %s304 = smul.u32 2, %s22
      %s305 = smul.u32 2, %s22
      %p306 = scmp.lt.s32.totalorder %s21, 1
      %s307 = scalar_select %p306, %s21, 1
      %p308 = scmp.lt.s32.totalorder %s305, 1
      %s309 = scalar_select %p308, %s305, 1
      %s310 = smul.addr %s307, 2
      %s311 = sadd.s32 %s309, %s310
      %s312 = scalar_lea.vmem %s1, %s311
      %s313 = smul.u32 2, %s22
      %s314 = smul.u32 2, %s22
      %p315 = scmp.lt.s32.totalorder %s21, 1
      %s316 = scalar_select %p315, %s21, 1
      %p317 = scmp.lt.s32.totalorder %s314, 1
      %s318 = scalar_select %p317, %s314, 1
      %s319 = smul.addr %s316, 2
      %s320 = sadd.s32 %s318, %s319
      %s321 = smul.addr %s320, 4
      %s322 = scalar_lea.vmem %s6, %s321
      %s323 = smul.u32 2, %s22
      %v325 = vld [vmem:[%s312] sm:$0x3]
      %v326 = vld [vmem:[%s303] sm:$0xf]
      %328 = vst [vmem:[#allocation1] ss:$9 sm:$0xff] %v325
      %v329 = vld [vmem:[#allocation1] sm:$0xff]
      %v330 = vld [vmem:[#allocation1 + $0x9] sm:$0xff]
      %v331 = vpack.i.b16 %v329, %v329
      %v333 = vperm.slane %v331, 0
      %v334 = vpack.i.b16 %v330, %v330
      %v336 = vperm.slane %v334, 0
      %v337 = vunpack.c.l.bf16 %v333
      %v338 = vunpack.c.l.bf16 %v336
      %v339 = vunpack.c.l.bf16 %v326
      %341 = vst [vmem:[#allocation1] ss:$2 sm:$0xff] %v339
      %v342 = vld.sshfl [vmem:[#allocation1] sm:$0xff pattern:$0x75316420]
      %v343 = vld.sshfl [vmem:[#allocation1 + $0x8] sm:$0xff pattern:$0x75316420]
      %v346 = vmul.f32 %v337, %v342
      %v347 = vmul.f32 %v338, %v343
      %v348 = vpack.c.bf16 %v346, %v346
      %v349 = vpack.c.bf16 %v347, %v347
      %v350 = vld [vmem:[%s2] sm:$0x3]
      %v351 = vld [vmem:[%s3] sm:$0xf]
      %353 = vset.pattern.permute.xlu0 0
      %354 = vperm.xlu0 %353, %v351
      %v355 = vpop.permute.xlu0 %354
      %vm357 = vcmask 31744
      %v359 = vsel %vm357, %v350, 0
      %vm361 = vcmask 1041408
      %v363 = vsel %vm361, %v348, 0
      %v366 = vsel %vm361, %v349, 0
      %368 = vmatpush.bf16.msra.mxu0 0
      %369 = vmatpush.bf16.msra.mxu0 0
      %370 = vmatpush.bf16.msra.mxu0 0
      %371 = vmatpush.bf16.msra.mxu0 0
      %372 = vmatpush.bf16.msra.mxu0 0
      %373 = vmatpush.bf16.msra.mxu0 0
      %374 = vmatpush.bf16.msra.mxu0 0
      %375 = vmatpush.bf16.msra.mxu0 %v363
      %376 = vmatmul.bf16.gmra.mxu0 %v359
      %v377 = vpop.f32.mrf.mxu0
      %v378 = vadd.f32 %v355, %v377
      %v379 = vpop.f32.mrf.mxu0
      %380 = vdwg.mxu0
      %381 = vmatpush.bf16.msra.mxu0 0
      %382 = vmatpush.bf16.msra.mxu0 0
      %383 = vmatpush.bf16.msra.mxu0 0
      %384 = vmatpush.bf16.msra.mxu0 0
      %385 = vmatpush.bf16.msra.mxu0 0
      %386 = vmatpush.bf16.msra.mxu0 0
      %387 = vmatpush.bf16.msra.mxu0 0
      %388 = vmatpush.bf16.msra.mxu0 %v366
      %389 = vmatmul.bf16.gmra.mxu0 %v359
      %v390 = vpop.f32.mrf.mxu0
      %v391 = vadd.f32 %v355, %v390
      %v392 = vpop.f32.mrf.mxu0
      %393 = vdwg.mxu0
      %v394 = vld [vmem:[%s4] sm:$0xf]
      %396 = vset.pattern.permute.xlu0 0
      %397 = vperm.xlu0 %396, %v394
      %v398 = vpop.permute.xlu0 %397
      %v400 = vmul.f32 %v378, %v398
      %v401 = vmul.f32 %v391, %v398
      %v402 = vld [vmem:[%s5] sm:$0xf]
      %404 = vset.pattern.permute.xlu0 0
      %405 = vperm.xlu0 %404, %v402
      %v406 = vpop.permute.xlu0 %405
      %v408 = vadd.f32 %v400, %v406
      %v409 = vadd.f32 %v401, %v406
      %v412 = vrot.slane %v409, 4
      %vm413 = vcmask 1043456
      %v414 = vsel %vm413, %v408, %v412
      %416 = vst [vmem:[%s322] sm:$0xff] %v414
      %s417 = smul.u32 2, %s22
      %p418 = scmp.lt.s32.totalorder %s21, 1
      %s419 = scalar_select %p418, %s21, 1
      %p420 = scmp.lt.s32.totalorder %s417, 1
      %s421 = scalar_select %p420, %s417, 1
      %s422 = smul.addr %s419, 2
      %s423 = sadd.s32 %s421, %s422
      %s424 = smul.addr %s423, 4
      %s425 = scalar_lea.vmem %s6, %s424
      // Predicated region
      $region45: #{grid_attention_block_2d.5} parent=43 // pred_check
        %p426 = pneg %p189
      $region46: #{grid_attention_block_2d.5} parent=43 // pred_check_branch
        %428 = sbr.rel (%p426) target = $region48
      $region47: #{grid_attention_block_2d.5} parent=43 // pred_region
        %s429 = smul.u32 2, %s22
      $region48: #{grid_attention_block_2d.5} parent=43 // pred_fallthru
        _
    $region44: #{grid_attention_block_2d.5} parent=5 // pred_fallthru
      _
    %p430 = scmp.le.s32.totalorder 2, %s12
    // Predicated region
    $region49: #{grid_attention_block_2d.5} parent=5 // pred_check
      %p431 = pneg %p430
    $region50: #{grid_attention_block_2d.5} parent=5 // pred_check_branch
      %433 = sbr.rel (%p431) target = $region52
    $region51: #{grid_attention_block_2d.5} parent=5 // pred_region
      %s434 = ssub.s32 %s12, 2
      // Predicated region
      $region53: #{grid_attention_block_2d.5} parent=51 // pred_check
        %p435 = pneg %p195
      $region54: #{grid_attention_block_2d.5} parent=51 // pred_check_branch
        %437 = sbr.rel (%p435) target = $region56
      $region55: #{grid_attention_block_2d.5} parent=51 // pred_region
        %s438 = smul.u32 2, %s24
        %p439 = scmp.lt.s32.totalorder %s23, 1
        %s440 = scalar_select %p439, %s23, 1
        %p441 = scmp.lt.s32.totalorder %s438, 1
        %s442 = scalar_select %p441, %s438, 1
        %s443 = smul.addr %s440, 2
        %s444 = sadd.s32 %s442, %s443
        %s445 = smul.addr %s444, 4
        %s446 = scalar_lea.vmem %s6, %s445
      $region56: #{grid_attention_block_2d.5} parent=51 // pred_fallthru
        _
    $region52: #{grid_attention_block_2d.5} parent=5 // pred_fallthru
      _
  $region6: #{grid_attention_block_2d.5} parent=0 // loop_footer
    %s16 = sadd.s32 1, %s12
  $region7: #{grid_attention_block_2d.5} parent=0 // loop_footer_branch
    %11 = sbr.rel target = $region3
  $region8: #{grid_attention_block_2d.5} parent=0 // loop_exit
    _

// kernel: grid_attention_block_2d.4
$region0: #{grid_attention_block_2d.4}
  #allocation0 [shape = 'u32[]', space=smem, size = 0x4, offset = 0x4, fixed_abs, tag = 'smem constant byte address 0x4 - core index']
  #allocation1 [shape = 'u32[72,128]{1,0:T(1,128)}', space=vmem, size = 0x9000, scoped, tag = 'internal scratch']
  %s0 = inlined_call_operand.vmem [shape: bf16[2,4,256], index: 0, kind: input, shape index: {}]
  %s1 = inlined_call_operand.vmem [shape: bf16[2,1,256], index: 1, kind: input, shape index: {}]
  %s2 = inlined_call_operand.vmem [shape: bf16[4,4], index: 2, kind: input, shape index: {}]
  %s3 = inlined_call_operand.vmem [shape: f32[4,1], index: 3, kind: input, shape index: {}]
  %s4 = inlined_call_operand.vmem [shape: f32[2,1,4,1], index: 4, kind: output, shape index: {0}]
  %s5 = inlined_call_operand.vmem [shape: f32[2,1,4,1], index: 5, kind: output, shape index: {1}]
  %6 = xla_tuple %s4, %s5
  %s7 = sld [smem:[#allocation0]]
  $region57: #{grid_attention_block_2d.4} parent=0
    _
  %s9 = ssub.s32 1, %s7
  %s10 = scalar_select 0, %s9, %s7
  loop: start=0, step=1, limit=4
  $region2: #{grid_attention_block_2d.4} parent=0 // loop_pre_header
    _
  $region3: #{grid_attention_block_2d.4} parent=0 // loop_header
    %s12 = sphi 0, %s16
    %p13 = scmp.ge.s32.totalorder %s12, 4
    %s19 = sphi 0, %s31
    %s20 = sphi 0, %s27
    %s21 = sphi 0, %s19
    %s22 = sphi 0, %s20
    %s23 = sphi 0, %s21
    %s24 = sphi 0, %s22
    %s36 = sphi 0, %s38
    %s39 = sphi 0, %s36
    %s40 = sphi 0, %s39
    %s56 = sphi 0, %s40
    %s64 = sphi 0, %s66
    %s67 = sphi 0, %s64
    %s68 = sphi 0, %s67
    %s84 = sphi 0, %s68
    %s88 = sphi 0, %s88
    %s90 = sphi 0, %s88
    %s91 = sphi 0, %s90
    %s105 = sphi 0, %s91
    %s109 = sphi 0, %s109
    %s111 = sphi 0, %s109
    %s112 = sphi 0, %s111
    %s126 = sphi 0, %s112
    %s134 = sphi 0, %s136
    %s137 = sphi 0, %s134
    %s138 = sphi 0, %s137
    %s154 = sphi 0, %s138
    %s162 = sphi 0, %s164
    %s165 = sphi 0, %s162
    %s166 = sphi 0, %s165
    %s182 = sphi 0, %s166
  $region4: #{grid_attention_block_2d.4} parent=0 // loop_header_branch
    %15 = sbr.rel (%p13) target = $region8
  $region5: #{grid_attention_block_2d.4} parent=0 // loop_body
    %s17 = ssub.s32 %s12, 1
    %s18 = ssub.s32 %s12, 2
    %s25 = sadd.s32 1, %s20
    %p26 = scmp.ge.s32.totalorder %s25, 1
    %s27 = scalar_select %p26, 0, %s25
    %s28 = sadd.s32 1, %s19
    %s29 = scalar_select %p26, %s28, %s19
    %p30 = scmp.ge.s32.totalorder %s29, 2
    %s31 = scalar_select %p30, 0, %s29
    %s32 = ssub.s32 %s19, %s31
    %s33 = ssub.s32 %s20, %s27
    %s34 = sor.u32 %s32, %s33
    %p35 = scmp.eq.s32.totalorder %s34, 0
    %s37 = sadd.s32 %s36, 1
    %s38 = scalar_select %p35, %s36, %s37
    %p41 = pneg %p35
    %p42 = scmp.eq.s32.totalorder %s12, 1
    %p43 = por %p41, %p42
    %p44 = scmp.ne.s32.totalorder %s36, %s39
    %p45 = scmp.eq.s32.totalorder %s12, 0
    %p46 = por %p44, %p45
    %p47 = scmp.ne.s32.totalorder %s36, %s39
    %p48 = scmp.eq.s32.totalorder %s17, 1
    %p49 = por %p47, %p48
    %p50 = scmp.ne.s32.totalorder %s39, %s40
    %p51 = scmp.eq.s32.totalorder %s17, 0
    %p52 = por %p50, %p51
    %p53 = scmp.ne.s32.totalorder %s39, %s40
    %p54 = scmp.eq.s32.totalorder %s18, 1
    %p55 = por %p53, %p54
    %p57 = scmp.ne.s32.totalorder %s40, %s56
    %p58 = scmp.eq.s32.totalorder %s18, 0
    %p59 = por %p57, %p58
    %s60 = ssub.s32 %s19, %s31
    %s61 = ssub.s32 %s20, %s27
    %s62 = sor.u32 %s60, %s61
    %p63 = scmp.eq.s32.totalorder %s62, 0
    %s65 = sadd.s32 %s64, 1
    %s66 = scalar_select %p63, %s64, %s65
    %p69 = pneg %p63
    %p70 = scmp.eq.s32.totalorder %s12, 1
    %p71 = por %p69, %p70
    %p72 = scmp.ne.s32.totalorder %s64, %s67
    %p73 = scmp.eq.s32.totalorder %s12, 0
    %p74 = por %p72, %p73
    %p75 = scmp.ne.s32.totalorder %s64, %s67
    %p76 = scmp.eq.s32.totalorder %s17, 1
    %p77 = por %p75, %p76
    %p78 = scmp.ne.s32.totalorder %s67, %s68
    %p79 = scmp.eq.s32.totalorder %s17, 0
    %p80 = por %p78, %p79
    %p81 = scmp.ne.s32.totalorder %s67, %s68
    %p82 = scmp.eq.s32.totalorder %s18, 1
    %p83 = por %p81, %p82
    %p85 = scmp.ne.s32.totalorder %s68, %s84
    %p86 = scmp.eq.s32.totalorder %s18, 0
    %p87 = por %p85, %p86
    %s89 = sadd.s32 %s88, 1
    %p92 = scmp.eq.s32.totalorder %s12, 1
    %p93 = scmp.ne.s32.totalorder %s88, %s90
    %p94 = scmp.eq.s32.totalorder %s12, 0
    %p95 = por %p93, %p94
    %p96 = scmp.ne.s32.totalorder %s88, %s90
    %p97 = scmp.eq.s32.totalorder %s17, 1
    %p98 = por %p96, %p97
    %p99 = scmp.ne.s32.totalorder %s90, %s91
    %p100 = scmp.eq.s32.totalorder %s17, 0
    %p101 = por %p99, %p100
    %p102 = scmp.ne.s32.totalorder %s90, %s91
    %p103 = scmp.eq.s32.totalorder %s18, 1
    %p104 = por %p102, %p103
    %p106 = scmp.ne.s32.totalorder %s91, %s105
    %p107 = scmp.eq.s32.totalorder %s18, 0
    %p108 = por %p106, %p107
    %s110 = sadd.s32 %s109, 1
    %p113 = scmp.eq.s32.totalorder %s12, 1
    %p114 = scmp.ne.s32.totalorder %s109, %s111
    %p115 = scmp.eq.s32.totalorder %s12, 0
    %p116 = por %p114, %p115
    %p117 = scmp.ne.s32.totalorder %s109, %s111
    %p118 = scmp.eq.s32.totalorder %s17, 1
    %p119 = por %p117, %p118
    %p120 = scmp.ne.s32.totalorder %s111, %s112
    %p121 = scmp.eq.s32.totalorder %s17, 0
    %p122 = por %p120, %p121
    %p123 = scmp.ne.s32.totalorder %s111, %s112
    %p124 = scmp.eq.s32.totalorder %s18, 1
    %p125 = por %p123, %p124
    %p127 = scmp.ne.s32.totalorder %s112, %s126
    %p128 = scmp.eq.s32.totalorder %s18, 0
    %p129 = por %p127, %p128
    %s130 = ssub.s32 %s19, %s31
    %s131 = ssub.s32 %s20, %s27
    %s132 = sor.u32 %s130, %s131
    %p133 = scmp.eq.s32.totalorder %s132, 0
    %s135 = sadd.s32 %s134, 1
    %s136 = scalar_select %p133, %s134, %s135
    %p139 = pneg %p133
    %p140 = scmp.eq.s32.totalorder %s12, 1
    %p141 = por %p139, %p140
    %p142 = scmp.ne.s32.totalorder %s134, %s137
    %p143 = scmp.eq.s32.totalorder %s12, 0
    %p144 = por %p142, %p143
    %p145 = scmp.ne.s32.totalorder %s134, %s137
    %p146 = scmp.eq.s32.totalorder %s17, 1
    %p147 = por %p145, %p146
    %p148 = scmp.ne.s32.totalorder %s137, %s138
    %p149 = scmp.eq.s32.totalorder %s17, 0
    %p150 = por %p148, %p149
    %p151 = scmp.ne.s32.totalorder %s137, %s138
    %p152 = scmp.eq.s32.totalorder %s18, 1
    %p153 = por %p151, %p152
    %p155 = scmp.ne.s32.totalorder %s138, %s154
    %p156 = scmp.eq.s32.totalorder %s18, 0
    %p157 = por %p155, %p156
    %s158 = ssub.s32 %s19, %s31
    %s159 = ssub.s32 %s20, %s27
    %s160 = sor.u32 %s158, %s159
    %p161 = scmp.eq.s32.totalorder %s160, 0
    %s163 = sadd.s32 %s162, 1
    %s164 = scalar_select %p161, %s162, %s163
    %p167 = pneg %p161
    %p168 = scmp.eq.s32.totalorder %s12, 1
    %p169 = por %p167, %p168
    %p170 = scmp.ne.s32.totalorder %s162, %s165
    %p171 = scmp.eq.s32.totalorder %s12, 0
    %p172 = por %p170, %p171
    %p173 = scmp.ne.s32.totalorder %s162, %s165
    %p174 = scmp.eq.s32.totalorder %s17, 1
    %p175 = por %p173, %p174
    %p176 = scmp.ne.s32.totalorder %s165, %s166
    %p177 = scmp.eq.s32.totalorder %s17, 0
    %p178 = por %p176, %p177
    %p179 = scmp.ne.s32.totalorder %s165, %s166
    %p180 = scmp.eq.s32.totalorder %s18, 1
    %p181 = por %p179, %p180
    %p183 = scmp.ne.s32.totalorder %s166, %s182
    %p184 = scmp.eq.s32.totalorder %s18, 0
    %p185 = por %p183, %p184
    %p186 = scmp.le.s32.totalorder 1, %s12
    %p187 = scmp.lt.s32.totalorder %s12, 3
    %p188 = pnand %p186, %p187
    %p189 = pneg %p188
    // Predicated region
    $region9: #{grid_attention_block_2d.4} parent=5 // pred_check
      _
    $region10: #{grid_attention_block_2d.4} parent=5 // pred_check_branch
      %191 = sbr.rel (%p188) target = $region12
    $region11: #{grid_attention_block_2d.4} parent=5 // pred_region
      %s192 = ssub.s32 %s12, 1
      // Predicated region
      $region13: #{grid_attention_block_2d.4} parent=11 // pred_check
        %p193 = pneg %p101
      $region14: #{grid_attention_block_2d.4} parent=11 // pred_check_branch
        %195 = sbr.rel (%p193) target = $region16
      $region15: #{grid_attention_block_2d.4} parent=11 // pred_region
        _
      $region16: #{grid_attention_block_2d.4} parent=11 // pred_fallthru
        _
      // Predicated region
      $region17: #{grid_attention_block_2d.4} parent=11 // pred_check
        %p196 = pneg %p122
      $region18: #{grid_attention_block_2d.4} parent=11 // pred_check_branch
        %198 = sbr.rel (%p196) target = $region20
      $region19: #{grid_attention_block_2d.4} parent=11 // pred_region
        _
      $region20: #{grid_attention_block_2d.4} parent=11 // pred_fallthru
        _
    $region12: #{grid_attention_block_2d.4} parent=5 // pred_fallthru
      _
    %p199 = scmp.lt.s32.totalorder %s12, 2
    // Predicated region
    $region21: #{grid_attention_block_2d.4} parent=5 // pred_check
      %p200 = pneg %p199
    $region22: #{grid_attention_block_2d.4} parent=5 // pred_check_branch
      %202 = sbr.rel (%p200) target = $region24
    $region23: #{grid_attention_block_2d.4} parent=5 // pred_region
      // Predicated region
      $region25: #{grid_attention_block_2d.4} parent=23 // pred_check
        %p203 = pneg %p46
      $region26: #{grid_attention_block_2d.4} parent=23 // pred_check_branch
        %205 = sbr.rel (%p203) target = $region28
      $region27: #{grid_attention_block_2d.4} parent=23 // pred_region
        %s206 = smul.u32 2, %s20
        %p207 = scmp.lt.s32.totalorder %s19, 1
        %s208 = scalar_select %p207, %s19, 1
        %p209 = scmp.lt.s32.totalorder %s206, 1
        %s210 = scalar_select %p209, %s206, 1
        %s211 = smul.addr %s208, 2
        %s212 = sadd.s32 %s210, %s211
        %s213 = smul.addr %s212, 2
        %s214 = scalar_lea.vmem %s0, %s213
        %s215 = smul.u32 2, %s20
      $region28: #{grid_attention_block_2d.4} parent=23 // pred_fallthru
        _
      // Predicated region
      $region29: #{grid_attention_block_2d.4} parent=23 // pred_check
        %p216 = pneg %p74
      $region30: #{grid_attention_block_2d.4} parent=23 // pred_check_branch
        %218 = sbr.rel (%p216) target = $region32
      $region31: #{grid_attention_block_2d.4} parent=23 // pred_region
        %s219 = smul.u32 2, %s20
        %p220 = scmp.lt.s32.totalorder %s19, 1
        %s221 = scalar_select %p220, %s19, 1
        %p222 = scmp.lt.s32.totalorder %s219, 1
        %s223 = scalar_select %p222, %s219, 1
        %s224 = smul.addr %s221, 2
        %s225 = sadd.s32 %s223, %s224
        %s226 = scalar_lea.vmem %s1, %s225
        %s227 = smul.u32 2, %s20
      $region32: #{grid_attention_block_2d.4} parent=23 // pred_fallthru
        _
    $region24: #{grid_attention_block_2d.4} parent=5 // pred_fallthru
      _
    %p228 = scmp.le.s32.totalorder 1, %s12
    %p229 = scmp.lt.s32.totalorder %s12, 3
    %p230 = pnand %p228, %p229
    %p231 = pneg %p230
    // Predicated region
    $region33: #{grid_attention_block_2d.4} parent=5 // pred_check
      _
    $region34: #{grid_attention_block_2d.4} parent=5 // pred_check_branch
      %233 = sbr.rel (%p230) target = $region36
    $region35: #{grid_attention_block_2d.4} parent=5 // pred_region
      %s234 = ssub.s32 %s12, 1
      %s235 = smul.u32 2, %s22
      %p236 = scmp.lt.s32.totalorder %s21, 1
      %s237 = scalar_select %p236, %s21, 1
      %p238 = scmp.lt.s32.totalorder %s235, 1
      %s239 = scalar_select %p238, %s235, 1
      %s240 = smul.addr %s237, 2
      %s241 = sadd.s32 %s239, %s240
      %s242 = smul.addr %s241, 2
      %s243 = scalar_lea.vmem %s0, %s242
      %p244 = pneg %p52
      %p245 = pneg %p49
      %s246 = smul.u32 2, %s22
      %p247 = scmp.lt.s32.totalorder %s21, 1
      %s248 = scalar_select %p247, %s21, 1
      %p249 = scmp.lt.s32.totalorder %s246, 1
      %s250 = scalar_select %p249, %s246, 1
      %s251 = smul.addr %s248, 2
      %s252 = sadd.s32 %s250, %s251
      %s253 = scalar_lea.vmem %s1, %s252
      %p254 = pneg %p80
      %p255 = pneg %p77
      %p256 = pneg %p101
      %p257 = pneg %p98
      %p258 = pneg %p122
      %p259 = pneg %p119
      %p260 = pneg %p150
      %p261 = pneg %p147
      %p262 = scmp.lt.s32.totalorder %s21, 1
      %s263 = scalar_select %p262, %s21, 1
      %p264 = scmp.lt.s32.totalorder %s22, 0
      %s265 = scalar_select %p264, %s22, 0
      %s266 = sadd.s32 %s265, %s263
      %s267 = smul.addr %s266, 4
      %s268 = scalar_lea.vmem %s4, %s267
      %p269 = pneg %p178
      %p270 = pneg %p175
      %p271 = scmp.lt.s32.totalorder %s21, 1
      %s272 = scalar_select %p271, %s21, 1
      %p273 = scmp.lt.s32.totalorder %s22, 0
      %s274 = scalar_select %p273, %s22, 0
      %s275 = sadd.s32 %s274, %s272
      %s276 = smul.addr %s275, 4
      %s277 = scalar_lea.vmem %s5, %s276
      %s278 = smul.u32 2, %s22
      %p279 = scmp.lt.s32.totalorder %s21, 1
      %s280 = scalar_select %p279, %s21, 1
      %p281 = scmp.lt.s32.totalorder %s278, 1
      %s282 = scalar_select %p281, %s278, 1
      %s283 = smul.addr %s280, 2
      %s284 = sadd.s32 %s282, %s283
      %s285 = smul.addr %s284, 2
      %s286 = scalar_lea.vmem %s0, %s285
      %s287 = smul.u32 2, %s22
      %s288 = smul.u32 2, %s22
      %p289 = scmp.lt.s32.totalorder %s21, 1
      %s290 = scalar_select %p289, %s21, 1
      %p291 = scmp.lt.s32.totalorder %s288, 1
      %s292 = scalar_select %p291, %s288, 1
      %s293 = smul.addr %s290, 2
      %s294 = sadd.s32 %s292, %s293
      %s295 = scalar_lea.vmem %s1, %s294
      %s296 = smul.u32 2, %s22
      %p297 = scmp.lt.s32.totalorder %s21, 1
      %s298 = scalar_select %p297, %s21, 1
      %p299 = scmp.lt.s32.totalorder %s22, 0
      %s300 = scalar_select %p299, %s22, 0
      %s301 = sadd.s32 %s300, %s298
      %s302 = smul.addr %s301, 4
      %s303 = scalar_lea.vmem %s4, %s302
      %p304 = scmp.lt.s32.totalorder %s21, 1
      %s305 = scalar_select %p304, %s21, 1
      %p306 = scmp.lt.s32.totalorder %s22, 0
      %s307 = scalar_select %p306, %s22, 0
      %s308 = sadd.s32 %s307, %s305
      %s309 = smul.addr %s308, 4
      %s310 = scalar_lea.vmem %s5, %s309
      %v312 = vld [vmem:[%s295] sm:$0x3]
      %v313 = vld [vmem:[%s286] sm:$0xf]
      %315 = vst [vmem:[#allocation1] ss:$9 sm:$0xff] %v312
      %v316 = vld [vmem:[#allocation1] sm:$0xff]
      %v317 = vld [vmem:[#allocation1 + $0x9] sm:$0xff]
      %v318 = vpack.i.b16 %v316, %v316
      %v320 = vperm.slane %v318, 0
      %v321 = vpack.i.b16 %v317, %v317
      %v323 = vperm.slane %v321, 0
      %v324 = vunpack.c.l.bf16 %v320
      %v325 = vunpack.c.l.bf16 %v323
      %v326 = vunpack.c.l.bf16 %v313
      %328 = vst [vmem:[#allocation1] ss:$2 sm:$0xff] %v326
      %v329 = vld.sshfl [vmem:[#allocation1] sm:$0xff pattern:$0x75316420]
      %v330 = vld.sshfl [vmem:[#allocation1 + $0x8] sm:$0xff pattern:$0x75316420]
      %v333 = vmul.f32 %v324, %v329
      %v334 = vmul.f32 %v325, %v330
      %v335 = vpack.c.bf16 %v333, %v333
      %v336 = vpack.c.bf16 %v334, %v334
      %v337 = vld [vmem:[%s2] sm:$0x3]
      %v338 = vld [vmem:[%s3] sm:$0xf]
      %340 = vset.pattern.permute.xlu0 0
      %341 = vperm.xlu0 %340, %v338
      %v342 = vpop.permute.xlu0 %341
      %vm344 = vcmask 31744
      %v346 = vsel %vm344, %v337, 0
      %vm348 = vcmask 1041408
      %v350 = vsel %vm348, %v335, 0
      %v353 = vsel %vm348, %v336, 0
      %355 = vmatpush.bf16.msra.mxu0 0
      %356 = vmatpush.bf16.msra.mxu0 0
      %357 = vmatpush.bf16.msra.mxu0 0
      %358 = vmatpush.bf16.msra.mxu0 0
      %359 = vmatpush.bf16.msra.mxu0 0
      %360 = vmatpush.bf16.msra.mxu0 0
      %361 = vmatpush.bf16.msra.mxu0 0
      %362 = vmatpush.bf16.msra.mxu0 %v350
      %363 = vmatmul.bf16.gmra.mxu0 %v346
      %v364 = vpop.f32.mrf.mxu0
      %v365 = vadd.f32 %v342, %v364
      %v366 = vpop.f32.mrf.mxu0
      %367 = vdwg.mxu0
      %368 = vmatpush.bf16.msra.mxu0 0
      %369 = vmatpush.bf16.msra.mxu0 0
      %370 = vmatpush.bf16.msra.mxu0 0
      %371 = vmatpush.bf16.msra.mxu0 0
      %372 = vmatpush.bf16.msra.mxu0 0
      %373 = vmatpush.bf16.msra.mxu0 0
      %374 = vmatpush.bf16.msra.mxu0 0
      %375 = vmatpush.bf16.msra.mxu0 %v353
      %376 = vmatmul.bf16.gmra.mxu0 %v346
      %v377 = vpop.f32.mrf.mxu0
      %v378 = vadd.f32 %v342, %v377
      %v379 = vpop.f32.mrf.mxu0
      %380 = vdwg.mxu0
      %vm381 = vcmask 1043456
      %v382 = vsel %vm381, %v365, 0.0
      %v383 = vsel %vm381, %v378, 0.0
      %v384 = vadd.f32 %v382, %v383
      %385 = vadd.xlane.f32.xlu0 %v384
      %v386 = vpop.xlane.xlu0 %385
      %vm387 = vcmask 3072
      %388 = vst.msk [vmem:[%s303] sm:$0xf] %vm387, %v386
      %v389 = vmul.f32 %v365, %v365
      %v390 = vmul.f32 %v378, %v378
      %v391 = vsel %vm381, %v389, 0.0
      %v392 = vsel %vm381, %v390, 0.0
      %v393 = vadd.f32 %v391, %v392
      %394 = vadd.xlane.f32.xlu0 %v393
      %v395 = vpop.xlane.xlu0 %394
      %396 = vst.msk [vmem:[%s310] sm:$0xf] %vm387, %v395
      %p397 = scmp.lt.s32.totalorder %s21, 1
      %s398 = scalar_select %p397, %s21, 1
      %p399 = scmp.lt.s32.totalorder %s22, 0
      %s400 = scalar_select %p399, %s22, 0
      %s401 = sadd.s32 %s400, %s398
      %s402 = smul.addr %s401, 4
      %s403 = scalar_lea.vmem %s4, %s402
      %p404 = scmp.lt.s32.totalorder %s21, 1
      %s405 = scalar_select %p404, %s21, 1
      %p406 = scmp.lt.s32.totalorder %s22, 0
      %s407 = scalar_select %p406, %s22, 0
      %s408 = sadd.s32 %s407, %s405
      %s409 = smul.addr %s408, 4
      %s410 = scalar_lea.vmem %s5, %s409
      // Predicated region
      $region37: #{grid_attention_block_2d.4} parent=35 // pred_check
        %p411 = pneg %p147
      $region38: #{grid_attention_block_2d.4} parent=35 // pred_check_branch
        %413 = sbr.rel (%p411) target = $region40
      $region39: #{grid_attention_block_2d.4} parent=35 // pred_region
        _
      $region40: #{grid_attention_block_2d.4} parent=35 // pred_fallthru
        _
      // Predicated region
      $region41: #{grid_attention_block_2d.4} parent=35 // pred_check
        %p414 = pneg %p175
      $region42: #{grid_attention_block_2d.4} parent=35 // pred_check_branch
        %416 = sbr.rel (%p414) target = $region44
      $region43: #{grid_attention_block_2d.4} parent=35 // pred_region
        _
      $region44: #{grid_attention_block_2d.4} parent=35 // pred_fallthru
        _
    $region36: #{grid_attention_block_2d.4} parent=5 // pred_fallthru
      _
    %p417 = scmp.le.s32.totalorder 2, %s12
    // Predicated region
    $region45: #{grid_attention_block_2d.4} parent=5 // pred_check
      %p418 = pneg %p417
    $region46: #{grid_attention_block_2d.4} parent=5 // pred_check_branch
      %420 = sbr.rel (%p418) target = $region48
    $region47: #{grid_attention_block_2d.4} parent=5 // pred_region
      %s421 = ssub.s32 %s12, 2
      // Predicated region
      $region49: #{grid_attention_block_2d.4} parent=47 // pred_check
        %p422 = pneg %p153
      $region50: #{grid_attention_block_2d.4} parent=47 // pred_check_branch
        %424 = sbr.rel (%p422) target = $region52
      $region51: #{grid_attention_block_2d.4} parent=47 // pred_region
        %p425 = scmp.lt.s32.totalorder %s23, 1
        %s426 = scalar_select %p425, %s23, 1
        %p427 = scmp.lt.s32.totalorder %s24, 0
        %s428 = scalar_select %p427, %s24, 0
        %s429 = sadd.s32 %s428, %s426
        %s430 = smul.addr %s429, 4
        %s431 = scalar_lea.vmem %s4, %s430
      $region52: #{grid_attention_block_2d.4} parent=47 // pred_fallthru
        _
      // Predicated region
      $region53: #{grid_attention_block_2d.4} parent=47 // pred_check
        %p432 = pneg %p181
      $region54: #{grid_attention_block_2d.4} parent=47 // pred_check_branch
        %434 = sbr.rel (%p432) target = $region56
      $region55: #{grid_attention_block_2d.4} parent=47 // pred_region
        %p435 = scmp.lt.s32.totalorder %s23, 1
        %s436 = scalar_select %p435, %s23, 1
        %p437 = scmp.lt.s32.totalorder %s24, 0
        %s438 = scalar_select %p437, %s24, 0
        %s439 = sadd.s32 %s438, %s436
        %s440 = smul.addr %s439, 4
        %s441 = scalar_lea.vmem %s5, %s440
      $region56: #{grid_attention_block_2d.4} parent=47 // pred_fallthru
        _
    $region48: #{grid_attention_block_2d.4} parent=5 // pred_fallthru
      _
  $region6: #{grid_attention_block_2d.4} parent=0 // loop_footer
    %s16 = sadd.s32 1, %s12
  $region7: #{grid_attention_block_2d.4} parent=0 // loop_footer_branch
    %11 = sbr.rel target = $region3
  $region8: #{grid_attention_block_2d.4} parent=0 // loop_exit
    _

</llo_original>
